<compile_context>
chip_gen: v7x
topology: tpu7x:2x2x1
jax: 0.10.0
libtpu: 0.0.40
codegen_flags: <defaults>
</compile_context>

<pallas_src>
import jax
import jax.numpy as jnp
from jax.experimental import pallas as pl
from jax.experimental.pallas import tpu as pltpu


def actor_kernel(xt_ref, w1_ref, b1_ref, w2_ref, b2_ref, wh_ref, bh_ref, out_ref):
    hp = jax.lax.Precision.HIGHEST
    xt = xt_ref[...]                                          # (in_dim, bT), batch on lanes

    # layer1: h1^T = W1 @ x^T + b1 ; ReLU     (W1: (64, in_dim), b1: (64, 1))
    h1 = jnp.dot(w1_ref[...], xt, precision=hp,
                 preferred_element_type=jnp.float32) + b1_ref[...]
    h1 = jnp.maximum(h1, 0.0)                                 # (64, bT)

    # layer2: h2^T = W2 @ h1^T + b2 ; ReLU    (W2: (32, 64), b2: (32, 1))
    h2 = jnp.dot(w2_ref[...], h1, precision=hp,
                 preferred_element_type=jnp.float32) + b2_ref[...]
    h2 = jnp.maximum(h2, 0.0)                                 # (32, bT)

    # fused heads: [actor_mu | actor_sigma]^T in one matmul, one lane-dense store
    heads = jnp.dot(wh_ref[...], h2, precision=hp,
                    preferred_element_type=jnp.float32) + bh_ref[...]
    out_ref[...] = heads.astype(out_ref.dtype)                # (2*out_dim, bT)


def actor_forward(x, params, *, block_b=None):
    """x: (B, input_dim) float32. Returns (mu, sigma), each (B, out_dim) float32."""
    B, in_dim = x.shape
    w1, b1 = params["w1"], params["b1"]                # (64, in_dim), (64, 1)
    w2, b2 = params["w2"], params["b2"]                # (32, 64),     (32, 1)
    wh, bh = params["w_heads"], params["b_heads"]      # (2*out, 32),  (2*out, 1)
    out2 = wh.shape[0]
    out_dim = out2 // 2

    # Tile choice: whole batch in a single grid step for B <= 1024 (grid-step
    # overhead dominates this tiny MLP); otherwise 512-wide lane-aligned tiles.
    if block_b is None:
        block_b = B if B <= 1024 else 512
    if block_b >= B:
        block_b = B                                     # single step: block == full dim
    else:
        block_b = max(128, (block_b // 128) * 128)      # lane-aligned multi-step tiles

    num_tiles = (B + block_b - 1) // block_b
    Bp = num_tiles * block_b

    xt = x.astype(jnp.float32).T                        # (in_dim, B): batch on lanes
    if Bp != B:
        xt = jnp.pad(xt, ((0, 0), (0, Bp - B)))         # no ragged masked tail tile

    # Weights/biases: constant index_map -> same block every grid step, so the
    # pipeline keeps them resident in VMEM (no re-DMA across iterations).
    const = lambda a: pl.BlockSpec(a.shape, lambda i: (0, 0))

    in_specs = [
        pl.BlockSpec((in_dim, block_b), lambda i: (0, i)),    # x^T tile advances on lanes
        const(w1), const(b1),
        const(w2), const(b2),
        const(wh), const(bh),
    ]
    out_specs = pl.BlockSpec((out2, block_b), lambda i: (0, i))

    flops = 2 * Bp * (in_dim * w1.shape[0] + w1.shape[0] * w2.shape[0] + w2.shape[0] * out2)
    bytes_accessed = (xt.size + w1.size + b1.size + w2.size + b2.size
                      + wh.size + bh.size + out2 * Bp) * 4

    heads_t = pl.pallas_call(
        actor_kernel,
        out_shape=jax.ShapeDtypeStruct((out2, Bp), jnp.float32),
        grid=(num_tiles,),
        in_specs=in_specs,
        out_specs=out_specs,
        compiler_params=pltpu.CompilerParams(
            dimension_semantics=("parallel",) if num_tiles > 1 else ("arbitrary",)),
        cost_estimate=pl.CostEstimate(
            flops=flops, transcendentals=0, bytes_accessed=bytes_accessed),
    )(xt, w1, b1, w2, b2, wh, bh)

    heads_t = heads_t[:, :B]                            # drop batch padding
    mu = heads_t[:out_dim, :].T                         # (B, out_dim)
    sigma = heads_t[out_dim:, :].T                      # (B, out_dim)
    return mu, sigma


def init_actor_params(key, input_dim, output_dim):
    """Deterministic init mimicking torch.nn.Linear (uniform +-1/sqrt(fan_in)),
    weights kept in PyTorch (out, in) layout for the feature-major kernel."""
    def linear(key, fan_in, fan_out):
        kw, kb = jax.random.split(key)
        bound = 1.0 / jnp.sqrt(float(fan_in))
        w = jax.random.uniform(kw, (fan_out, fan_in), jnp.float32, -bound, bound)
        b = jax.random.uniform(kb, (fan_out, 1), jnp.float32, -bound, bound)
        return w, b

    k1, k2, k3, k4 = jax.random.split(key, 4)
    w1, b1 = linear(k1, input_dim, 64)
    w2, b2 = linear(k2, 64, 32)
    w_mu, b_mu = linear(k3, 32, output_dim)
    w_sigma, b_sigma = linear(k4, 32, output_dim)
    # Pack the two heads once at init: single head matmul + single packed store.
    w_heads = jnp.concatenate([w_mu, w_sigma], axis=0)        # (2*out, 32)
    b_heads = jnp.concatenate([b_mu, b_sigma], axis=0)        # (2*out, 1)
    return dict(w1=w1, b1=b1, w2=w2, b2=b2,
                w_mu=w_mu, b_mu=b_mu, w_sigma=w_sigma, b_sigma=b_sigma,
                w_heads=w_heads, b_heads=b_heads)


def actor_ref(x, p):
    """Pure-JAX fp32 reference matching the PyTorch module (HIGHEST precision dots)."""
    hp = jax.lax.Precision.HIGHEST
    h1 = jnp.maximum(jnp.dot(x, p["w1"].T, precision=hp) + p["b1"][:, 0], 0.0)
    h2 = jnp.maximum(jnp.dot(h1, p["w2"].T, precision=hp) + p["b2"][:, 0], 0.0)
    mu = jnp.dot(h2, p["w_mu"].T, precision=hp) + p["b_mu"][:, 0]
    sigma = jnp.dot(h2, p["w_sigma"].T, precision=hp) + p["b_sigma"][:, 0]
    return mu, sigma


if __name__ == "__main__":
    key = jax.random.PRNGKey(0)
    k_params, k_x1, k_x2 = jax.random.split(key, 3)

    input_dim = 16      # input_shape = (16,)
    output_dim = 4      # output_shape = 4
    params = init_actor_params(k_params, input_dim, output_dim)

    # Small batch: single grid step, whole batch as one lane-major block.
    batch = 16
    x = jax.random.normal(k_x1, (batch, input_dim), jnp.float32)
    mu, sigma = actor_forward(x, params)
    jax.block_until_ready((mu, sigma))
    mu_ref, sigma_ref = actor_ref(x, params)
    assert mu.shape == (batch, output_dim) and sigma.shape == (batch, output_dim)
    assert jnp.allclose(mu, mu_ref, atol=1e-5, rtol=1e-5)
    assert jnp.allclose(sigma, sigma_ref, atol=1e-5, rtol=1e-5)

    # Ragged larger batch: exercises the multi-step lane-tiled path + padding.
    batch2 = 300
    x2 = jax.random.normal(k_x2, (batch2, input_dim), jnp.float32)
    mu2, sigma2 = actor_forward(x2, params, block_b=128)
    jax.block_until_ready((mu2, sigma2))
    mu2_ref, sigma2_ref = actor_ref(x2, params)
    assert mu2.shape == (batch2, output_dim) and sigma2.shape == (batch2, output_dim)
    assert jnp.allclose(mu2, mu2_ref, atol=1e-5, rtol=1e-5)
    assert jnp.allclose(sigma2, sigma2_ref, atol=1e-5, rtol=1e-5)

    print("KERNEL_OK")
</pallas_src>

<mosaic_0001>
module attributes {stable_mosaic.version = 11 : i64} {
  func.func @actor_kernel(%arg0: i32, %arg1: memref<16x16xf32, #tpu.memory_space<vmem>>, %arg2: memref<64x16xf32, #tpu.memory_space<vmem>>, %arg3: memref<64x1xf32, #tpu.memory_space<vmem>>, %arg4: memref<32x64xf32, #tpu.memory_space<vmem>>, %arg5: memref<32x1xf32, #tpu.memory_space<vmem>>, %arg6: memref<8x32xf32, #tpu.memory_space<vmem>>, %arg7: memref<8x1xf32, #tpu.memory_space<vmem>>, %arg8: memref<8x16xf32, #tpu.memory_space<vmem>>) attributes {dimension_semantics = [#tpu.dimension_semantics<arbitrary>], iteration_bounds = array<i64: 1>, scalar_prefetch = 0 : i64, scratch_operands = 0 : i64, tpu.core_type = #tpu.core_type<tc>, window_params = [{transform_indices = @transform_0, window_bounds = array<i64: 16, 16>}, {pipeline_mode = #tpu.pipeline_mode<synchronous>, transform_indices = @transform_1, window_bounds = array<i64: 64, 16>}, {pipeline_mode = #tpu.pipeline_mode<synchronous>, transform_indices = @transform_2, window_bounds = array<i64: 64, 1>}, {pipeline_mode = #tpu.pipeline_mode<synchronous>, transform_indices = @transform_3, window_bounds = array<i64: 32, 64>}, {pipeline_mode = #tpu.pipeline_mode<synchronous>, transform_indices = @transform_4, window_bounds = array<i64: 32, 1>}, {pipeline_mode = #tpu.pipeline_mode<synchronous>, transform_indices = @transform_5, window_bounds = array<i64: 8, 32>}, {pipeline_mode = #tpu.pipeline_mode<synchronous>, transform_indices = @transform_6, window_bounds = array<i64: 8, 1>}, {transform_indices = @transform_7, window_bounds = array<i64: 8, 16>}]} {
    %c0 = arith.constant 0 : index
    %c0_0 = arith.constant 0 : index
    %0 = vector.load %arg1[%c0, %c0_0] : memref<16x16xf32, #tpu.memory_space<vmem>>, vector<16x16xf32>
    %c0_1 = arith.constant 0 : index
    %c0_2 = arith.constant 0 : index
    %1 = vector.load %arg2[%c0_1, %c0_2] : memref<64x16xf32, #tpu.memory_space<vmem>>, vector<64x16xf32>
    %cst = arith.constant dense<0.000000e+00> : vector<64x16xf32>
    %2 = tpu.matmul %1, %0, %cst {dimension_numbers = #tpu.dot_dimension_numbers<[1], [0], [0], [1], [0, 0, 1, 1], [], []>, precision = #tpu.contract_precision<fp32>} : vector<64x16xf32>, vector<16x16xf32>, vector<64x16xf32> -> vector<64x16xf32>
    %c0_3 = arith.constant 0 : index
    %c0_4 = arith.constant 0 : index
    %3 = vector.load %arg3[%c0_3, %c0_4] : memref<64x1xf32, #tpu.memory_space<vmem>>, vector<64x1xf32>
    %4 = vector.broadcast %3 : vector<64x1xf32> to vector<64x16xf32>
    %5 = arith.addf %2, %4 : vector<64x16xf32>
    %cst_5 = arith.constant 0.000000e+00 : f32
    %6 = vector.broadcast %cst_5 : f32 to vector<64x16xf32>
    %7 = arith.maximumf %5, %6 : vector<64x16xf32>
    %c0_6 = arith.constant 0 : index
    %c0_7 = arith.constant 0 : index
    %8 = vector.load %arg4[%c0_6, %c0_7] : memref<32x64xf32, #tpu.memory_space<vmem>>, vector<32x64xf32>
    %cst_8 = arith.constant dense<0.000000e+00> : vector<32x16xf32>
    %9 = tpu.matmul %8, %7, %cst_8 {dimension_numbers = #tpu.dot_dimension_numbers<[1], [0], [0], [1], [0, 0, 1, 1], [], []>, precision = #tpu.contract_precision<fp32>} : vector<32x64xf32>, vector<64x16xf32>, vector<32x16xf32> -> vector<32x16xf32>
    %c0_9 = arith.constant 0 : index
    %c0_10 = arith.constant 0 : index
    %10 = vector.load %arg5[%c0_9, %c0_10] : memref<32x1xf32, #tpu.memory_space<vmem>>, vector<32x1xf32>
    %11 = vector.broadcast %10 : vector<32x1xf32> to vector<32x16xf32>
    %12 = arith.addf %9, %11 : vector<32x16xf32>
    %cst_11 = arith.constant 0.000000e+00 : f32
    %13 = vector.broadcast %cst_11 : f32 to vector<32x16xf32>
    %14 = arith.maximumf %12, %13 : vector<32x16xf32>
    %c0_12 = arith.constant 0 : index
    %c0_13 = arith.constant 0 : index
    %15 = vector.load %arg6[%c0_12, %c0_13] : memref<8x32xf32, #tpu.memory_space<vmem>>, vector<8x32xf32>
    %cst_14 = arith.constant dense<0.000000e+00> : vector<8x16xf32>
    %16 = tpu.matmul %15, %14, %cst_14 {dimension_numbers = #tpu.dot_dimension_numbers<[1], [0], [0], [1], [0, 0, 1, 1], [], []>, precision = #tpu.contract_precision<fp32>} : vector<8x32xf32>, vector<32x16xf32>, vector<8x16xf32> -> vector<8x16xf32>
    %c0_15 = arith.constant 0 : index
    %c0_16 = arith.constant 0 : index
    %17 = vector.load %arg7[%c0_15, %c0_16] : memref<8x1xf32, #tpu.memory_space<vmem>>, vector<8x1xf32>
    %18 = vector.broadcast %17 : vector<8x1xf32> to vector<8x16xf32>
    %19 = arith.addf %16, %18 : vector<8x16xf32>
    %c0_17 = arith.constant 0 : index
    %c0_18 = arith.constant 0 : index
    %20 = vector.load %arg8[%c0_17, %c0_18] : memref<8x16xf32, #tpu.memory_space<vmem>>, vector<8x16xf32>
    tpu.vector_store %arg8[%c0_17, %c0_18], %19 {strides = array<i32>} : memref<8x16xf32, #tpu.memory_space<vmem>>, vector<8x16xf32>,
    return
  }
  func.func @transform_0(%arg0: i32) -> (i32, i32) {
    %c0_i32 = arith.constant 0 : i32
    %c0_i32_0 = arith.constant 0 : i32
    return %c0_i32, %arg0 : i32, i32
  }
  func.func @transform_1(%arg0: i32) -> (i32, i32) {
    %c0_i32 = arith.constant 0 : i32
    %c0_i32_0 = arith.constant 0 : i32
    %c0_i32_1 = arith.constant 0 : i32
    return %c0_i32, %c0_i32_0 : i32, i32
  }
  func.func @transform_2(%arg0: i32) -> (i32, i32) {
    %c0_i32 = arith.constant 0 : i32
    %c0_i32_0 = arith.constant 0 : i32
    %c0_i32_1 = arith.constant 0 : i32
    return %c0_i32, %c0_i32_0 : i32, i32
  }
  func.func @transform_3(%arg0: i32) -> (i32, i32) {
    %c0_i32 = arith.constant 0 : i32
    %c0_i32_0 = arith.constant 0 : i32
    %c0_i32_1 = arith.constant 0 : i32
    return %c0_i32, %c0_i32_0 : i32, i32
  }
  func.func @transform_4(%arg0: i32) -> (i32, i32) {
    %c0_i32 = arith.constant 0 : i32
    %c0_i32_0 = arith.constant 0 : i32
    %c0_i32_1 = arith.constant 0 : i32
    return %c0_i32, %c0_i32_0 : i32, i32
  }
  func.func @transform_5(%arg0: i32) -> (i32, i32) {
    %c0_i32 = arith.constant 0 : i32
    %c0_i32_0 = arith.constant 0 : i32
    %c0_i32_1 = arith.constant 0 : i32
    return %c0_i32, %c0_i32_0 : i32, i32
  }
  func.func @transform_6(%arg0: i32) -> (i32, i32) {
    %c0_i32 = arith.constant 0 : i32
    %c0_i32_0 = arith.constant 0 : i32
    %c0_i32_1 = arith.constant 0 : i32
    return %c0_i32, %c0_i32_0 : i32, i32
  }
  func.func @transform_7(%arg0: i32) -> (i32, i32) {
    %c0_i32 = arith.constant 0 : i32
    %c0_i32_0 = arith.constant 0 : i32
    return %c0_i32, %arg0 : i32, i32
  }
}

</mosaic_0001>

<llo_original>
// kernel: tpu_custom_call.1
$region0: #{tpu_custom_call.1}
  #allocation0 [shape = 'u32[]', space=smem, size = 0x4, offset = 0x4, fixed_abs, tag = 'smem constant byte address 0x4 - core index']
  #allocation1 [shape = 'u32[144,128]{1,0:T(1,128)}', space=vmem, size = 0x12000, scoped, tag = 'internal scratch']
  %s0 = inlined_call_operand.vmem [shape: f32[16,16], index: 0, kind: input, shape index: {}]
  %s1 = inlined_call_operand.vmem [shape: f32[64,16], index: 1, kind: input, shape index: {}]
  %s2 = inlined_call_operand.vmem [shape: f32[64,1], index: 2, kind: input, shape index: {}]
  %s3 = inlined_call_operand.vmem [shape: f32[32,64], index: 3, kind: input, shape index: {}]
  %s4 = inlined_call_operand.vmem [shape: f32[32,1], index: 4, kind: input, shape index: {}]
  %s5 = inlined_call_operand.vmem [shape: f32[8,32], index: 5, kind: input, shape index: {}]
  %s6 = inlined_call_operand.vmem [shape: f32[8,1], index: 6, kind: input, shape index: {}]
  %s7 = inlined_call_operand.hbm [shape: f32[8,16], index: 7, kind: output, shape index: {}]
  %s8 = sld [smem:[#allocation0]]
  $region38: #{tpu_custom_call.1} parent=0
    _
  %s10 = ssub.s32 1, %s8
  %s11 = scalar_select 0, %s10, %s8
  $region1: #{tpu_custom_call.1} parent=0
    #allocation2 [shape = 'u8[4096]{0}', space=vmem, size = 0x1000, scoped, tag = 'output window, operand 0, single buffered']
    #allocation3 [shape = 's32[1]{0}', space=sflag, size = 0x4, scoped, tag = 'scoped memory for tpu_custom_call.1']
    %12 = vsyncpa [#allocation3], 0
    // Predicated region
    $region2: #{tpu_custom_call.1} parent=1 // pred_check
      _
    $region3: #{tpu_custom_call.1} parent=1 // pred_check_branch
      %14 = sbr.rel (0) target = $region5
    $region4: #{tpu_custom_call.1} parent=1 // pred_region
      _
    $region5: #{tpu_custom_call.1} parent=1 // pred_fallthru
      _
    // Predicated region
    $region6: #{tpu_custom_call.1} parent=1 // pred_check
      _
    $region7: #{tpu_custom_call.1} parent=1 // pred_check_branch
      %16 = sbr.rel (0) target = $region9
    $region8: #{tpu_custom_call.1} parent=1 // pred_region
      _
    $region9: #{tpu_custom_call.1} parent=1 // pred_fallthru
      _
    // Predicated region
    $region10: #{tpu_custom_call.1} parent=1 // pred_check
      _
    $region11: #{tpu_custom_call.1} parent=1 // pred_check_branch
      %18 = sbr.rel (0) target = $region13
    $region12: #{tpu_custom_call.1} parent=1 // pred_region
      _
    $region13: #{tpu_custom_call.1} parent=1 // pred_fallthru
      _
    // Predicated region
    $region14: #{tpu_custom_call.1} parent=1 // pred_check
      _
    $region15: #{tpu_custom_call.1} parent=1 // pred_check_branch
      %20 = sbr.rel (0) target = $region17
    $region16: #{tpu_custom_call.1} parent=1 // pred_region
      _
    $region17: #{tpu_custom_call.1} parent=1 // pred_fallthru
      _
    // Predicated region
    $region18: #{tpu_custom_call.1} parent=1 // pred_check
      _
    $region19: #{tpu_custom_call.1} parent=1 // pred_check_branch
      %22 = sbr.rel (0) target = $region21
    $region20: #{tpu_custom_call.1} parent=1 // pred_region
      _
    $region21: #{tpu_custom_call.1} parent=1 // pred_fallthru
      _
    // Predicated region
    $region22: #{tpu_custom_call.1} parent=1 // pred_check
      _
    $region23: #{tpu_custom_call.1} parent=1 // pred_check_branch
      %24 = sbr.rel (0) target = $region25
    $region24: #{tpu_custom_call.1} parent=1 // pred_region
      _
    $region25: #{tpu_custom_call.1} parent=1 // pred_fallthru
      _
    // Predicated region
    $region26: #{tpu_custom_call.1} parent=1 // pred_check
      _
    $region27: #{tpu_custom_call.1} parent=1 // pred_check_branch
      %26 = sbr.rel (0) target = $region29
    $region28: #{tpu_custom_call.1} parent=1 // pred_region
      _
    $region29: #{tpu_custom_call.1} parent=1 // pred_fallthru
      _
    %v27 = vld [vmem:[%s0] sm:$0xff]
    %v28 = vld [vmem:[%s0 + $0x8] sm:$0xff]
    %v29 = vld [vmem:[%s1] sm:$0xff]
    %v30 = vld [vmem:[%s1 + $0x8] sm:$0xff]
    %v31 = vld [vmem:[%s1 + $0x10] sm:$0xff]
    %v32 = vld [vmem:[%s1 + $0x18] sm:$0xff]
    %v33 = vld [vmem:[%s1 + $0x20] sm:$0xff]
    %v34 = vld [vmem:[%s1 + $0x28] sm:$0xff]
    %v35 = vld [vmem:[%s1 + $0x30] sm:$0xff]
    %v36 = vld [vmem:[%s1 + $0x38] sm:$0xff]
    %v37 = vld [vmem:[%s2] sm:$0xff]
    %v38 = vld [vmem:[%s2 + $0x8] sm:$0xff]
    %v39 = vld [vmem:[%s2 + $0x10] sm:$0xff]
    %v40 = vld [vmem:[%s2 + $0x18] sm:$0xff]
    %v41 = vld [vmem:[%s2 + $0x20] sm:$0xff]
    %v42 = vld [vmem:[%s2 + $0x28] sm:$0xff]
    %v43 = vld [vmem:[%s2 + $0x30] sm:$0xff]
    %v44 = vld [vmem:[%s2 + $0x38] sm:$0xff]
    %46 = vset.pattern.permute.xlu0 0
    %47 = vperm.xlu0 %46, %v37
    %v48 = vpop.permute.xlu0 %47
    %51 = vset.pattern.permute.xlu0 0
    %52 = vperm.xlu0 %51, %v38
    %v53 = vpop.permute.xlu0 %52
    %56 = vset.pattern.permute.xlu0 0
    %57 = vperm.xlu0 %56, %v39
    %v58 = vpop.permute.xlu0 %57
    %61 = vset.pattern.permute.xlu0 0
    %62 = vperm.xlu0 %61, %v40
    %v63 = vpop.permute.xlu0 %62
    %66 = vset.pattern.permute.xlu0 0
    %67 = vperm.xlu0 %66, %v41
    %v68 = vpop.permute.xlu0 %67
    %71 = vset.pattern.permute.xlu0 0
    %72 = vperm.xlu0 %71, %v42
    %v73 = vpop.permute.xlu0 %72
    %76 = vset.pattern.permute.xlu0 0
    %77 = vperm.xlu0 %76, %v43
    %v78 = vpop.permute.xlu0 %77
    %81 = vset.pattern.permute.xlu0 0
    %82 = vperm.xlu0 %81, %v44
    %v83 = vpop.permute.xlu0 %82
    %vm85 = vcmask 130048
    %v87 = vsel %vm85, %v29, 0
    %v90 = vsel %vm85, %v30, 0
    %v93 = vsel %vm85, %v31, 0
    %v96 = vsel %vm85, %v32, 0
    %v99 = vsel %vm85, %v33, 0
    %v102 = vsel %vm85, %v34, 0
    %v105 = vsel %vm85, %v35, 0
    %v108 = vsel %vm85, %v36, 0
    %110 = vmatprep.subr.mxu0 0.0
    %v111 = vand.u32 %v27, 4294901760
    %112 = vmatpush1.msra.mxu0 %v111
    %113 = vmatprep.subr.mxu0 0.0
    %v114 = vand.u32 %v28, 4294901760
    %115 = vmatpush1.msra.mxu0 %v114
    %116 = vmatprep.subr.mxu0 0.0
    %117 = vmatpush1.msra.mxu0 0.0
    %118 = vmatprep.subr.mxu0 0.0
    %119 = vmatpush1.msra.mxu0 0.0
    %120 = vmatprep.subr.mxu0 0.0
    %121 = vmatpush1.msra.mxu0 0.0
    %122 = vmatprep.subr.mxu0 0.0
    %123 = vmatpush1.msra.mxu0 0.0
    %124 = vmatprep.subr.mxu0 0.0
    %125 = vmatpush1.msra.mxu0 0.0
    %126 = vmatprep.subr.mxu0 0.0
    %127 = vmatpush1.msra.mxu0 0.0
    %128 = vmatprep.subr.mxu0 0.0
    %129 = vmatpush1.msra.mxu0 0.0
    %130 = vmatprep.subr.mxu0 0.0
    %131 = vmatpush1.msra.mxu0 0.0
    %132 = vmatprep.subr.mxu0 0.0
    %133 = vmatpush1.msra.mxu0 0.0
    %134 = vmatprep.subr.mxu0 0.0
    %135 = vmatpush1.msra.mxu0 0.0
    %136 = vmatprep.subr.mxu0 0.0
    %137 = vmatpush1.msra.mxu0 0.0
    %138 = vmatprep.subr.mxu0 0.0
    %139 = vmatpush1.msra.mxu0 0.0
    %140 = vmatprep.subr.mxu0 0.0
    %141 = vmatpush1.msra.mxu0 0.0
    %142 = vmatprep.subr.mxu0 0.0
    %143 = vmatpush1.msra.mxu0 0.0
    %144 = vmatprep.subr.mxu0 0.0
    %145 = vmatpush1.msra.mxu0 0.0
    %146 = vmatprep.subr.mxu0 0.0
    %147 = vmatpush1.msra.mxu0 0.0
    %148 = vmatprep.subr.mxu0 0.0
    %149 = vmatpush1.msra.mxu0 0.0
    %150 = vmatprep.subr.mxu0 0.0
    %151 = vmatpush1.msra.mxu0 0.0
    %152 = vmatprep.subr.mxu0 0.0
    %153 = vmatpush1.msra.mxu0 0.0
    %154 = vmatprep.subr.mxu0 0.0
    %155 = vmatpush1.msra.mxu0 0.0
    %156 = vmatprep.subr.mxu0 0.0
    %157 = vmatpush1.msra.mxu0 0.0
    %158 = vmatprep.subr.mxu0 0.0
    %159 = vmatpush1.msra.mxu0 0.0
    %160 = vmatprep.subr.mxu0 0.0
    %161 = vmatpush1.msra.mxu0 0.0
    %162 = vmatprep.subr.mxu0 0.0
    %163 = vmatpush1.msra.mxu0 0.0
    %164 = vmatprep.subr.mxu0 0.0
    %165 = vmatpush1.msra.mxu0 0.0
    %166 = vmatprep.subr.mxu0 0.0
    %167 = vmatpush1.msra.mxu0 0.0
    %168 = vmatprep.subr.mxu0 0.0
    %169 = vmatpush1.msra.mxu0 0.0
    %170 = vmatprep.subr.mxu0 0.0
    %171 = vmatpush1.msra.mxu0 0.0
    %172 = vmatprep.subr.mxu0 0.0
    %173 = vmatpush1.msra.mxu0 0.0
    %174 = vmatprep.subr.mxu0 0.0
    %175 = vmatpush1.msra.mxu0 0.0
    %176 = vmatprep.mubr.f32.mxu0 0.0
    %v177 = vand.u32 %v87, 4294901760
    %v178 = vsub.f32 %v87, %v177
    %v179 = vand.u32 %v178, 4294901760
    %v180 = vsub.f32 %v178, %v179
    %v181 = vand.u32 %v180, 4294901760
    %182 = vmatmul.mubr.f32.gmra.mrb[0].mxu0 %v181
    %v183 = vpop.f32.mrb[0].mxu0
    %v184 = vadd.f32 %v48, %v183
    %v185 = vpop.f32.mrb[0].mxu0
    %186 = vmatprep.mubr.f32.mxu0 0.0
    %v187 = vand.u32 %v90, 4294901760
    %v188 = vsub.f32 %v90, %v187
    %v189 = vand.u32 %v188, 4294901760
    %v190 = vsub.f32 %v188, %v189
    %v191 = vand.u32 %v190, 4294901760
    %192 = vmatmul.mubr.f32.gmra.mrb[0].mxu0 %v191
    %v193 = vpop.f32.mrb[0].mxu0
    %v194 = vadd.f32 %v53, %v193
    %v195 = vpop.f32.mrb[0].mxu0
    %196 = vmatprep.mubr.f32.mxu0 0.0
    %v197 = vand.u32 %v93, 4294901760
    %v198 = vsub.f32 %v93, %v197
    %v199 = vand.u32 %v198, 4294901760
    %v200 = vsub.f32 %v198, %v199
    %v201 = vand.u32 %v200, 4294901760
    %202 = vmatmul.mubr.f32.gmra.mrb[0].mxu0 %v201
    %v203 = vpop.f32.mrb[0].mxu0
    %v204 = vadd.f32 %v58, %v203
    %v205 = vpop.f32.mrb[0].mxu0
    %206 = vmatprep.mubr.f32.mxu0 0.0
    %v207 = vand.u32 %v96, 4294901760
    %v208 = vsub.f32 %v96, %v207
    %v209 = vand.u32 %v208, 4294901760
    %v210 = vsub.f32 %v208, %v209
    %v211 = vand.u32 %v210, 4294901760
    %212 = vmatmul.mubr.f32.gmra.mrb[0].mxu0 %v211
    %v213 = vpop.f32.mrb[0].mxu0
    %v214 = vadd.f32 %v63, %v213
    %v215 = vpop.f32.mrb[0].mxu0
    %216 = vmatprep.mubr.f32.mxu0 0.0
    %v217 = vand.u32 %v99, 4294901760
    %v218 = vsub.f32 %v99, %v217
    %v219 = vand.u32 %v218, 4294901760
    %v220 = vsub.f32 %v218, %v219
    %v221 = vand.u32 %v220, 4294901760
    %222 = vmatmul.mubr.f32.gmra.mrb[0].mxu0 %v221
    %v223 = vpop.f32.mrb[0].mxu0
    %v224 = vadd.f32 %v68, %v223
    %v225 = vpop.f32.mrb[0].mxu0
    %226 = vmatprep.mubr.f32.mxu0 0.0
    %v227 = vand.u32 %v102, 4294901760
    %v228 = vsub.f32 %v102, %v227
    %v229 = vand.u32 %v228, 4294901760
    %v230 = vsub.f32 %v228, %v229
    %v231 = vand.u32 %v230, 4294901760
    %232 = vmatmul.mubr.f32.gmra.mrb[0].mxu0 %v231
    %v233 = vpop.f32.mrb[0].mxu0
    %v234 = vadd.f32 %v73, %v233
    %v235 = vpop.f32.mrb[0].mxu0
    %236 = vmatprep.mubr.f32.mxu0 0.0
    %v237 = vand.u32 %v105, 4294901760
    %v238 = vsub.f32 %v105, %v237
    %v239 = vand.u32 %v238, 4294901760
    %v240 = vsub.f32 %v238, %v239
    %v241 = vand.u32 %v240, 4294901760
    %242 = vmatmul.mubr.f32.gmra.mrb[0].mxu0 %v241
    %v243 = vpop.f32.mrb[0].mxu0
    %v244 = vadd.f32 %v78, %v243
    %v245 = vpop.f32.mrb[0].mxu0
    %246 = vmatprep.mubr.f32.mxu0 0.0
    %v247 = vand.u32 %v108, 4294901760
    %v248 = vsub.f32 %v108, %v247
    %v249 = vand.u32 %v248, 4294901760
    %v250 = vsub.f32 %v248, %v249
    %v251 = vand.u32 %v250, 4294901760
    %252 = vmatmul.mubr.f32.gmra.mrb[0].mxu0 %v251
    %v253 = vpop.f32.mrb[0].mxu0
    %v254 = vadd.f32 %v83, %v253
    %v255 = vpop.f32.mrb[0].mxu0
    %256 = vdwg.mxu0
    %257 = vmatprep.subr.mxu0 0.0
    %v258 = vand.u32 %v27, 4294901760
    %v259 = vsub.f32 %v27, %v258
    %v260 = vand.u32 %v259, 4294901760
    %v261 = vsub.f32 %v259, %v260
    %v262 = vand.u32 %v261, 4294901760
    %263 = vmatpush1.msra.mxu0 %v262
    %264 = vmatprep.subr.mxu0 0.0
    %v265 = vand.u32 %v28, 4294901760
    %v266 = vsub.f32 %v28, %v265
    %v267 = vand.u32 %v266, 4294901760
    %v268 = vsub.f32 %v266, %v267
    %v269 = vand.u32 %v268, 4294901760
    %270 = vmatpush1.msra.mxu0 %v269
    %271 = vmatprep.subr.mxu0 0.0
    %272 = vmatpush1.msra.mxu0 0.0
    %273 = vmatprep.subr.mxu0 0.0
    %274 = vmatpush1.msra.mxu0 0.0
    %275 = vmatprep.subr.mxu0 0.0
    %276 = vmatpush1.msra.mxu0 0.0
    %277 = vmatprep.subr.mxu0 0.0
    %278 = vmatpush1.msra.mxu0 0.0
    %279 = vmatprep.subr.mxu0 0.0
    %280 = vmatpush1.msra.mxu0 0.0
    %281 = vmatprep.subr.mxu0 0.0
    %282 = vmatpush1.msra.mxu0 0.0
    %283 = vmatprep.subr.mxu0 0.0
    %284 = vmatpush1.msra.mxu0 0.0
    %285 = vmatprep.subr.mxu0 0.0
    %286 = vmatpush1.msra.mxu0 0.0
    %287 = vmatprep.subr.mxu0 0.0
    %288 = vmatpush1.msra.mxu0 0.0
    %289 = vmatprep.subr.mxu0 0.0
    %290 = vmatpush1.msra.mxu0 0.0
    %291 = vmatprep.subr.mxu0 0.0
    %292 = vmatpush1.msra.mxu0 0.0
    %293 = vmatprep.subr.mxu0 0.0
    %294 = vmatpush1.msra.mxu0 0.0
    %295 = vmatprep.subr.mxu0 0.0
    %296 = vmatpush1.msra.mxu0 0.0
    %297 = vmatprep.subr.mxu0 0.0
    %298 = vmatpush1.msra.mxu0 0.0
    %299 = vmatprep.subr.mxu0 0.0
    %300 = vmatpush1.msra.mxu0 0.0
    %301 = vmatprep.subr.mxu0 0.0
    %302 = vmatpush1.msra.mxu0 0.0
    %303 = vmatprep.subr.mxu0 0.0
    %304 = vmatpush1.msra.mxu0 0.0
    %305 = vmatprep.subr.mxu0 0.0
    %306 = vmatpush1.msra.mxu0 0.0
    %307 = vmatprep.subr.mxu0 0.0
    %308 = vmatpush1.msra.mxu0 0.0
    %309 = vmatprep.subr.mxu0 0.0
    %310 = vmatpush1.msra.mxu0 0.0
    %311 = vmatprep.subr.mxu0 0.0
    %312 = vmatpush1.msra.mxu0 0.0
    %313 = vmatprep.subr.mxu0 0.0
    %314 = vmatpush1.msra.mxu0 0.0
    %315 = vmatprep.subr.mxu0 0.0
    %316 = vmatpush1.msra.mxu0 0.0
    %317 = vmatprep.subr.mxu0 0.0
    %318 = vmatpush1.msra.mxu0 0.0
    %319 = vmatprep.subr.mxu0 0.0
    %320 = vmatpush1.msra.mxu0 0.0
    %321 = vmatprep.subr.mxu0 0.0
    %322 = vmatpush1.msra.mxu0 0.0
    %323 = vmatprep.subr.mxu0 0.0
    %324 = vmatpush1.msra.mxu0 0.0
    %325 = vmatprep.subr.mxu0 0.0
    %326 = vmatpush1.msra.mxu0 0.0
    %327 = vmatprep.subr.mxu0 0.0
    %328 = vmatpush1.msra.mxu0 0.0
    %329 = vmatprep.subr.mxu0 0.0
    %330 = vmatpush1.msra.mxu0 0.0
    %331 = vmatprep.mubr.f32.mxu0 0.0
    %v332 = vand.u32 %v87, 4294901760
    %333 = vmatmul.mubr.f32.gmra.mrb[0].mxu0 %v332
    %v334 = vpop.f32.mrb[0].mxu0
    %v335 = vadd.f32 %v184, %v334
    %v336 = vpop.f32.mrb[0].mxu0
    %337 = vmatprep.mubr.f32.mxu0 0.0
    %v338 = vand.u32 %v90, 4294901760
    %339 = vmatmul.mubr.f32.gmra.mrb[0].mxu0 %v338
    %v340 = vpop.f32.mrb[0].mxu0
    %v341 = vadd.f32 %v194, %v340
    %v342 = vpop.f32.mrb[0].mxu0
    %343 = vmatprep.mubr.f32.mxu0 0.0
    %v344 = vand.u32 %v93, 4294901760
    %345 = vmatmul.mubr.f32.gmra.mrb[0].mxu0 %v344
    %v346 = vpop.f32.mrb[0].mxu0
    %v347 = vadd.f32 %v204, %v346
    %v348 = vpop.f32.mrb[0].mxu0
    %349 = vmatprep.mubr.f32.mxu0 0.0
    %v350 = vand.u32 %v96, 4294901760
    %351 = vmatmul.mubr.f32.gmra.mrb[0].mxu0 %v350
    %v352 = vpop.f32.mrb[0].mxu0
    %v353 = vadd.f32 %v214, %v352
    %v354 = vpop.f32.mrb[0].mxu0
    %355 = vmatprep.mubr.f32.mxu0 0.0
    %v356 = vand.u32 %v99, 4294901760
    %357 = vmatmul.mubr.f32.gmra.mrb[0].mxu0 %v356
    %v358 = vpop.f32.mrb[0].mxu0
    %v359 = vadd.f32 %v224, %v358
    %v360 = vpop.f32.mrb[0].mxu0
    %361 = vmatprep.mubr.f32.mxu0 0.0
    %v362 = vand.u32 %v102, 4294901760
    %363 = vmatmul.mubr.f32.gmra.mrb[0].mxu0 %v362
    %v364 = vpop.f32.mrb[0].mxu0
    %v365 = vadd.f32 %v234, %v364
    %v366 = vpop.f32.mrb[0].mxu0
    %367 = vmatprep.mubr.f32.mxu0 0.0
    %v368 = vand.u32 %v105, 4294901760
    %369 = vmatmul.mubr.f32.gmra.mrb[0].mxu0 %v368
    %v370 = vpop.f32.mrb[0].mxu0
    %v371 = vadd.f32 %v244, %v370
    %v372 = vpop.f32.mrb[0].mxu0
    %373 = vmatprep.mubr.f32.mxu0 0.0
    %v374 = vand.u32 %v108, 4294901760
    %375 = vmatmul.mubr.f32.gmra.mrb[0].mxu0 %v374
    %v376 = vpop.f32.mrb[0].mxu0
    %v377 = vadd.f32 %v254, %v376
    %v378 = vpop.f32.mrb[0].mxu0
    %379 = vdwg.mxu0
    %380 = vmatprep.subr.mxu0 0.0
    %v381 = vand.u32 %v27, 4294901760
    %v382 = vsub.f32 %v27, %v381
    %383 = vmatpush1.msra.mxu0 %v382
    %384 = vmatprep.subr.mxu0 0.0
    %v385 = vand.u32 %v28, 4294901760
    %v386 = vsub.f32 %v28, %v385
    %387 = vmatpush1.msra.mxu0 %v386
    %388 = vmatprep.subr.mxu0 0.0
    %389 = vmatpush1.msra.mxu0 0.0
    %390 = vmatprep.subr.mxu0 0.0
    %391 = vmatpush1.msra.mxu0 0.0
    %392 = vmatprep.subr.mxu0 0.0
    %393 = vmatpush1.msra.mxu0 0.0
    %394 = vmatprep.subr.mxu0 0.0
    %395 = vmatpush1.msra.mxu0 0.0
    %396 = vmatprep.subr.mxu0 0.0
    %397 = vmatpush1.msra.mxu0 0.0
    %398 = vmatprep.subr.mxu0 0.0
    %399 = vmatpush1.msra.mxu0 0.0
    %400 = vmatprep.subr.mxu0 0.0
    %401 = vmatpush1.msra.mxu0 0.0
    %402 = vmatprep.subr.mxu0 0.0
    %403 = vmatpush1.msra.mxu0 0.0
    %404 = vmatprep.subr.mxu0 0.0
    %405 = vmatpush1.msra.mxu0 0.0
    %406 = vmatprep.subr.mxu0 0.0
    %407 = vmatpush1.msra.mxu0 0.0
    %408 = vmatprep.subr.mxu0 0.0
    %409 = vmatpush1.msra.mxu0 0.0
    %410 = vmatprep.subr.mxu0 0.0
    %411 = vmatpush1.msra.mxu0 0.0
    %412 = vmatprep.subr.mxu0 0.0
    %413 = vmatpush1.msra.mxu0 0.0
    %414 = vmatprep.subr.mxu0 0.0
    %415 = vmatpush1.msra.mxu0 0.0
    %416 = vmatprep.subr.mxu0 0.0
    %417 = vmatpush1.msra.mxu0 0.0
    %418 = vmatprep.subr.mxu0 0.0
    %419 = vmatpush1.msra.mxu0 0.0
    %420 = vmatprep.subr.mxu0 0.0
    %421 = vmatpush1.msra.mxu0 0.0
    %422 = vmatprep.subr.mxu0 0.0
    %423 = vmatpush1.msra.mxu0 0.0
    %424 = vmatprep.subr.mxu0 0.0
    %425 = vmatpush1.msra.mxu0 0.0
    %426 = vmatprep.subr.mxu0 0.0
    %427 = vmatpush1.msra.mxu0 0.0
    %428 = vmatprep.subr.mxu0 0.0
    %429 = vmatpush1.msra.mxu0 0.0
    %430 = vmatprep.subr.mxu0 0.0
    %431 = vmatpush1.msra.mxu0 0.0
    %432 = vmatprep.subr.mxu0 0.0
    %433 = vmatpush1.msra.mxu0 0.0
    %434 = vmatprep.subr.mxu0 0.0
    %435 = vmatpush1.msra.mxu0 0.0
    %436 = vmatprep.subr.mxu0 0.0
    %437 = vmatpush1.msra.mxu0 0.0
    %438 = vmatprep.subr.mxu0 0.0
    %439 = vmatpush1.msra.mxu0 0.0
    %440 = vmatprep.subr.mxu0 0.0
    %441 = vmatpush1.msra.mxu0 0.0
    %442 = vmatprep.subr.mxu0 0.0
    %443 = vmatpush1.msra.mxu0 0.0
    %444 = vmatprep.subr.mxu0 0.0
    %445 = vmatpush1.msra.mxu0 0.0
    %446 = vmatprep.subr.mxu0 0.0
    %447 = vmatpush1.msra.mxu0 0.0
    %448 = vmatprep.mubr.f32.mxu0 0.0
    %v449 = vand.u32 %v87, 4294901760
    %v450 = vsub.f32 %v87, %v449
    %451 = vmatmul.mubr.f32.gmra.mrb[0].mxu0 %v450
    %v452 = vpop.f32.mrb[0].mxu0
    %v453 = vadd.f32 %v335, %v452
    %v454 = vpop.f32.mrb[0].mxu0
    %455 = vmatprep.mubr.f32.mxu0 0.0
    %v456 = vand.u32 %v90, 4294901760
    %v457 = vsub.f32 %v90, %v456
    %458 = vmatmul.mubr.f32.gmra.mrb[0].mxu0 %v457
    %v459 = vpop.f32.mrb[0].mxu0
    %v460 = vadd.f32 %v341, %v459
    %v461 = vpop.f32.mrb[0].mxu0
    %462 = vmatprep.mubr.f32.mxu0 0.0
    %v463 = vand.u32 %v93, 4294901760
    %v464 = vsub.f32 %v93, %v463
    %465 = vmatmul.mubr.f32.gmra.mrb[0].mxu0 %v464
    %v466 = vpop.f32.mrb[0].mxu0
    %v467 = vadd.f32 %v347, %v466
    %v468 = vpop.f32.mrb[0].mxu0
    %469 = vmatprep.mubr.f32.mxu0 0.0
    %v470 = vand.u32 %v96, 4294901760
    %v471 = vsub.f32 %v96, %v470
    %472 = vmatmul.mubr.f32.gmra.mrb[0].mxu0 %v471
    %v473 = vpop.f32.mrb[0].mxu0
    %v474 = vadd.f32 %v353, %v473
    %v475 = vpop.f32.mrb[0].mxu0
    %476 = vmatprep.mubr.f32.mxu0 0.0
    %v477 = vand.u32 %v99, 4294901760
    %v478 = vsub.f32 %v99, %v477
    %479 = vmatmul.mubr.f32.gmra.mrb[0].mxu0 %v478
    %v480 = vpop.f32.mrb[0].mxu0
    %v481 = vadd.f32 %v359, %v480
    %v482 = vpop.f32.mrb[0].mxu0
    %483 = vmatprep.mubr.f32.mxu0 0.0
    %v484 = vand.u32 %v102, 4294901760
    %v485 = vsub.f32 %v102, %v484
    %486 = vmatmul.mubr.f32.gmra.mrb[0].mxu0 %v485
    %v487 = vpop.f32.mrb[0].mxu0
    %v488 = vadd.f32 %v365, %v487
    %v489 = vpop.f32.mrb[0].mxu0
    %490 = vmatprep.mubr.f32.mxu0 0.0
    %v491 = vand.u32 %v105, 4294901760
    %v492 = vsub.f32 %v105, %v491
    %493 = vmatmul.mubr.f32.gmra.mrb[0].mxu0 %v492
    %v494 = vpop.f32.mrb[0].mxu0
    %v495 = vadd.f32 %v371, %v494
    %v496 = vpop.f32.mrb[0].mxu0
    %497 = vmatprep.mubr.f32.mxu0 0.0
    %v498 = vand.u32 %v108, 4294901760
    %v499 = vsub.f32 %v108, %v498
    %500 = vmatmul.mubr.f32.gmra.mrb[0].mxu0 %v499
    %v501 = vpop.f32.mrb[0].mxu0
    %v502 = vadd.f32 %v377, %v501
    %v503 = vpop.f32.mrb[0].mxu0
    %504 = vdwg.mxu0
    %505 = vmatprep.subr.mxu0 0.0
    %v506 = vand.u32 %v27, 4294901760
    %507 = vmatpush1.msra.mxu0 %v506
    %508 = vmatprep.subr.mxu0 0.0
    %v509 = vand.u32 %v28, 4294901760
    %510 = vmatpush1.msra.mxu0 %v509
    %511 = vmatprep.subr.mxu0 0.0
    %512 = vmatpush1.msra.mxu0 0.0
    %513 = vmatprep.subr.mxu0 0.0
    %514 = vmatpush1.msra.mxu0 0.0
    %515 = vmatprep.subr.mxu0 0.0
    %516 = vmatpush1.msra.mxu0 0.0
    %517 = vmatprep.subr.mxu0 0.0
    %518 = vmatpush1.msra.mxu0 0.0
    %519 = vmatprep.subr.mxu0 0.0
    %520 = vmatpush1.msra.mxu0 0.0
    %521 = vmatprep.subr.mxu0 0.0
    %522 = vmatpush1.msra.mxu0 0.0
    %523 = vmatprep.subr.mxu0 0.0
    %524 = vmatpush1.msra.mxu0 0.0
    %525 = vmatprep.subr.mxu0 0.0
    %526 = vmatpush1.msra.mxu0 0.0
    %527 = vmatprep.subr.mxu0 0.0
    %528 = vmatpush1.msra.mxu0 0.0
    %529 = vmatprep.subr.mxu0 0.0
    %530 = vmatpush1.msra.mxu0 0.0
    %531 = vmatprep.subr.mxu0 0.0
    %532 = vmatpush1.msra.mxu0 0.0
    %533 = vmatprep.subr.mxu0 0.0
    %534 = vmatpush1.msra.mxu0 0.0
    %535 = vmatprep.subr.mxu0 0.0
    %536 = vmatpush1.msra.mxu0 0.0
    %537 = vmatprep.subr.mxu0 0.0
    %538 = vmatpush1.msra.mxu0 0.0
    %539 = vmatprep.subr.mxu0 0.0
    %540 = vmatpush1.msra.mxu0 0.0
    %541 = vmatprep.subr.mxu0 0.0
    %542 = vmatpush1.msra.mxu0 0.0
    %543 = vmatprep.subr.mxu0 0.0
    %544 = vmatpush1.msra.mxu0 0.0
    %545 = vmatprep.subr.mxu0 0.0
    %546 = vmatpush1.msra.mxu0 0.0
    %547 = vmatprep.subr.mxu0 0.0
    %548 = vmatpush1.msra.mxu0 0.0
    %549 = vmatprep.subr.mxu0 0.0
    %550 = vmatpush1.msra.mxu0 0.0
    %551 = vmatprep.subr.mxu0 0.0
    %552 = vmatpush1.msra.mxu0 0.0
    %553 = vmatprep.subr.mxu0 0.0
    %554 = vmatpush1.msra.mxu0 0.0
    %555 = vmatprep.subr.mxu0 0.0
    %556 = vmatpush1.msra.mxu0 0.0
    %557 = vmatprep.subr.mxu0 0.0
    %558 = vmatpush1.msra.mxu0 0.0
    %559 = vmatprep.subr.mxu0 0.0
    %560 = vmatpush1.msra.mxu0 0.0
    %561 = vmatprep.subr.mxu0 0.0
    %562 = vmatpush1.msra.mxu0 0.0
    %563 = vmatprep.subr.mxu0 0.0
    %564 = vmatpush1.msra.mxu0 0.0
    %565 = vmatprep.subr.mxu0 0.0
    %566 = vmatpush1.msra.mxu0 0.0
    %567 = vmatprep.subr.mxu0 0.0
    %568 = vmatpush1.msra.mxu0 0.0
    %569 = vmatprep.subr.mxu0 0.0
    %570 = vmatpush1.msra.mxu0 0.0
    %571 = vmatprep.mubr.f32.mxu0 0.0
    %v572 = vand.u32 %v87, 4294901760
    %v573 = vsub.f32 %v87, %v572
    %v574 = vand.u32 %v573, 4294901760
    %575 = vmatmul.mubr.f32.gmra.mrb[0].mxu0 %v574
    %v576 = vpop.f32.mrb[0].mxu0
    %v577 = vadd.f32 %v453, %v576
    %v578 = vpop.f32.mrb[0].mxu0
    %579 = vmatprep.mubr.f32.mxu0 0.0
    %v580 = vand.u32 %v90, 4294901760
    %v581 = vsub.f32 %v90, %v580
    %v582 = vand.u32 %v581, 4294901760
    %583 = vmatmul.mubr.f32.gmra.mrb[0].mxu0 %v582
    %v584 = vpop.f32.mrb[0].mxu0
    %v585 = vadd.f32 %v460, %v584
    %v586 = vpop.f32.mrb[0].mxu0
    %587 = vmatprep.mubr.f32.mxu0 0.0
    %v588 = vand.u32 %v93, 4294901760
    %v589 = vsub.f32 %v93, %v588
    %v590 = vand.u32 %v589, 4294901760
    %591 = vmatmul.mubr.f32.gmra.mrb[0].mxu0 %v590
    %v592 = vpop.f32.mrb[0].mxu0
    %v593 = vadd.f32 %v467, %v592
    %v594 = vpop.f32.mrb[0].mxu0
    %595 = vmatprep.mubr.f32.mxu0 0.0
    %v596 = vand.u32 %v96, 4294901760
    %v597 = vsub.f32 %v96, %v596
    %v598 = vand.u32 %v597, 4294901760
    %599 = vmatmul.mubr.f32.gmra.mrb[0].mxu0 %v598
    %v600 = vpop.f32.mrb[0].mxu0
    %v601 = vadd.f32 %v474, %v600
    %v602 = vpop.f32.mrb[0].mxu0
    %603 = vmatprep.mubr.f32.mxu0 0.0
    %v604 = vand.u32 %v99, 4294901760
    %v605 = vsub.f32 %v99, %v604
    %v606 = vand.u32 %v605, 4294901760
    %607 = vmatmul.mubr.f32.gmra.mrb[0].mxu0 %v606
    %v608 = vpop.f32.mrb[0].mxu0
    %v609 = vadd.f32 %v481, %v608
    %v610 = vpop.f32.mrb[0].mxu0
    %611 = vmatprep.mubr.f32.mxu0 0.0
    %v612 = vand.u32 %v102, 4294901760
    %v613 = vsub.f32 %v102, %v612
    %v614 = vand.u32 %v613, 4294901760
    %615 = vmatmul.mubr.f32.gmra.mrb[0].mxu0 %v614
    %v616 = vpop.f32.mrb[0].mxu0
    %v617 = vadd.f32 %v488, %v616
    %v618 = vpop.f32.mrb[0].mxu0
    %619 = vmatprep.mubr.f32.mxu0 0.0
    %v620 = vand.u32 %v105, 4294901760
    %v621 = vsub.f32 %v105, %v620
    %v622 = vand.u32 %v621, 4294901760
    %623 = vmatmul.mubr.f32.gmra.mrb[0].mxu0 %v622
    %v624 = vpop.f32.mrb[0].mxu0
    %v625 = vadd.f32 %v495, %v624
    %v626 = vpop.f32.mrb[0].mxu0
    %627 = vmatprep.mubr.f32.mxu0 0.0
    %v628 = vand.u32 %v108, 4294901760
    %v629 = vsub.f32 %v108, %v628
    %v630 = vand.u32 %v629, 4294901760
    %631 = vmatmul.mubr.f32.gmra.mrb[0].mxu0 %v630
    %v632 = vpop.f32.mrb[0].mxu0
    %v633 = vadd.f32 %v502, %v632
    %v634 = vpop.f32.mrb[0].mxu0
    %635 = vdwg.mxu0
    %636 = vmatprep.subr.mxu0 0.0
    %v637 = vand.u32 %v27, 4294901760
    %v638 = vsub.f32 %v27, %v637
    %v639 = vand.u32 %v638, 4294901760
    %640 = vmatpush1.msra.mxu0 %v639
    %641 = vmatprep.subr.mxu0 0.0
    %v642 = vand.u32 %v28, 4294901760
    %v643 = vsub.f32 %v28, %v642
    %v644 = vand.u32 %v643, 4294901760
    %645 = vmatpush1.msra.mxu0 %v644
    %646 = vmatprep.subr.mxu0 0.0
    %647 = vmatpush1.msra.mxu0 0.0
    %648 = vmatprep.subr.mxu0 0.0
    %649 = vmatpush1.msra.mxu0 0.0
    %650 = vmatprep.subr.mxu0 0.0
    %651 = vmatpush1.msra.mxu0 0.0
    %652 = vmatprep.subr.mxu0 0.0
    %653 = vmatpush1.msra.mxu0 0.0
    %654 = vmatprep.subr.mxu0 0.0
    %655 = vmatpush1.msra.mxu0 0.0
    %656 = vmatprep.subr.mxu0 0.0
    %657 = vmatpush1.msra.mxu0 0.0
    %658 = vmatprep.subr.mxu0 0.0
    %659 = vmatpush1.msra.mxu0 0.0
    %660 = vmatprep.subr.mxu0 0.0
    %661 = vmatpush1.msra.mxu0 0.0
    %662 = vmatprep.subr.mxu0 0.0
    %663 = vmatpush1.msra.mxu0 0.0
    %664 = vmatprep.subr.mxu0 0.0
    %665 = vmatpush1.msra.mxu0 0.0
    %666 = vmatprep.subr.mxu0 0.0
    %667 = vmatpush1.msra.mxu0 0.0
    %668 = vmatprep.subr.mxu0 0.0
    %669 = vmatpush1.msra.mxu0 0.0
    %670 = vmatprep.subr.mxu0 0.0
    %671 = vmatpush1.msra.mxu0 0.0
    %672 = vmatprep.subr.mxu0 0.0
    %673 = vmatpush1.msra.mxu0 0.0
    %674 = vmatprep.subr.mxu0 0.0
    %675 = vmatpush1.msra.mxu0 0.0
    %676 = vmatprep.subr.mxu0 0.0
    %677 = vmatpush1.msra.mxu0 0.0
    %678 = vmatprep.subr.mxu0 0.0
    %679 = vmatpush1.msra.mxu0 0.0
    %680 = vmatprep.subr.mxu0 0.0
    %681 = vmatpush1.msra.mxu0 0.0
    %682 = vmatprep.subr.mxu0 0.0
    %683 = vmatpush1.msra.mxu0 0.0
    %684 = vmatprep.subr.mxu0 0.0
    %685 = vmatpush1.msra.mxu0 0.0
    %686 = vmatprep.subr.mxu0 0.0
    %687 = vmatpush1.msra.mxu0 0.0
    %688 = vmatprep.subr.mxu0 0.0
    %689 = vmatpush1.msra.mxu0 0.0
    %690 = vmatprep.subr.mxu0 0.0
    %691 = vmatpush1.msra.mxu0 0.0
    %692 = vmatprep.subr.mxu0 0.0
    %693 = vmatpush1.msra.mxu0 0.0
    %694 = vmatprep.subr.mxu0 0.0
    %695 = vmatpush1.msra.mxu0 0.0
    %696 = vmatprep.subr.mxu0 0.0
    %697 = vmatpush1.msra.mxu0 0.0
    %698 = vmatprep.subr.mxu0 0.0
    %699 = vmatpush1.msra.mxu0 0.0
    %700 = vmatprep.subr.mxu0 0.0
    %701 = vmatpush1.msra.mxu0 0.0
    %702 = vmatprep.subr.mxu0 0.0
    %703 = vmatpush1.msra.mxu0 0.0
    %704 = vmatprep.subr.mxu0 0.0
    %705 = vmatpush1.msra.mxu0 0.0
    %706 = vmatprep.mubr.f32.mxu0 0.0
    %v707 = vand.u32 %v87, 4294901760
    %708 = vmatmul.mubr.f32.gmra.mrb[0].mxu0 %v707
    %v709 = vpop.f32.mrb[0].mxu0
    %v710 = vadd.f32 %v577, %v709
    %v711 = vpop.f32.mrb[0].mxu0
    %712 = vmatprep.mubr.f32.mxu0 0.0
    %v713 = vand.u32 %v90, 4294901760
    %714 = vmatmul.mubr.f32.gmra.mrb[0].mxu0 %v713
    %v715 = vpop.f32.mrb[0].mxu0
    %v716 = vadd.f32 %v585, %v715
    %v717 = vpop.f32.mrb[0].mxu0
    %718 = vmatprep.mubr.f32.mxu0 0.0
    %v719 = vand.u32 %v93, 4294901760
    %720 = vmatmul.mubr.f32.gmra.mrb[0].mxu0 %v719
    %v721 = vpop.f32.mrb[0].mxu0
    %v722 = vadd.f32 %v593, %v721
    %v723 = vpop.f32.mrb[0].mxu0
    %724 = vmatprep.mubr.f32.mxu0 0.0
    %v725 = vand.u32 %v96, 4294901760
    %726 = vmatmul.mubr.f32.gmra.mrb[0].mxu0 %v725
    %v727 = vpop.f32.mrb[0].mxu0
    %v728 = vadd.f32 %v601, %v727
    %v729 = vpop.f32.mrb[0].mxu0
    %730 = vmatprep.mubr.f32.mxu0 0.0
    %v731 = vand.u32 %v99, 4294901760
    %732 = vmatmul.mubr.f32.gmra.mrb[0].mxu0 %v731
    %v733 = vpop.f32.mrb[0].mxu0
    %v734 = vadd.f32 %v609, %v733
    %v735 = vpop.f32.mrb[0].mxu0
    %736 = vmatprep.mubr.f32.mxu0 0.0
    %v737 = vand.u32 %v102, 4294901760
    %738 = vmatmul.mubr.f32.gmra.mrb[0].mxu0 %v737
    %v739 = vpop.f32.mrb[0].mxu0
    %v740 = vadd.f32 %v617, %v739
    %v741 = vpop.f32.mrb[0].mxu0
    %742 = vmatprep.mubr.f32.mxu0 0.0
    %v743 = vand.u32 %v105, 4294901760
    %744 = vmatmul.mubr.f32.gmra.mrb[0].mxu0 %v743
    %v745 = vpop.f32.mrb[0].mxu0
    %v746 = vadd.f32 %v625, %v745
    %v747 = vpop.f32.mrb[0].mxu0
    %748 = vmatprep.mubr.f32.mxu0 0.0
    %v749 = vand.u32 %v108, 4294901760
    %750 = vmatmul.mubr.f32.gmra.mrb[0].mxu0 %v749
    %v751 = vpop.f32.mrb[0].mxu0
    %v752 = vadd.f32 %v633, %v751
    %v753 = vpop.f32.mrb[0].mxu0
    %754 = vdwg.mxu0
    %755 = vmatprep.subr.mxu0 0.0
    %v756 = vand.u32 %v27, 4294901760
    %757 = vmatpush1.msra.mxu0 %v756
    %758 = vmatprep.subr.mxu0 0.0
    %v759 = vand.u32 %v28, 4294901760
    %760 = vmatpush1.msra.mxu0 %v759
    %761 = vmatprep.subr.mxu0 0.0
    %762 = vmatpush1.msra.mxu0 0.0
    %763 = vmatprep.subr.mxu0 0.0
    %764 = vmatpush1.msra.mxu0 0.0
    %765 = vmatprep.subr.mxu0 0.0
    %766 = vmatpush1.msra.mxu0 0.0
    %767 = vmatprep.subr.mxu0 0.0
    %768 = vmatpush1.msra.mxu0 0.0
    %769 = vmatprep.subr.mxu0 0.0
    %770 = vmatpush1.msra.mxu0 0.0
    %771 = vmatprep.subr.mxu0 0.0
    %772 = vmatpush1.msra.mxu0 0.0
    %773 = vmatprep.subr.mxu0 0.0
    %774 = vmatpush1.msra.mxu0 0.0
    %775 = vmatprep.subr.mxu0 0.0
    %776 = vmatpush1.msra.mxu0 0.0
    %777 = vmatprep.subr.mxu0 0.0
    %778 = vmatpush1.msra.mxu0 0.0
    %779 = vmatprep.subr.mxu0 0.0
    %780 = vmatpush1.msra.mxu0 0.0
    %781 = vmatprep.subr.mxu0 0.0
    %782 = vmatpush1.msra.mxu0 0.0
    %783 = vmatprep.subr.mxu0 0.0
    %784 = vmatpush1.msra.mxu0 0.0
    %785 = vmatprep.subr.mxu0 0.0
    %786 = vmatpush1.msra.mxu0 0.0
    %787 = vmatprep.subr.mxu0 0.0
    %788 = vmatpush1.msra.mxu0 0.0
    %789 = vmatprep.subr.mxu0 0.0
    %790 = vmatpush1.msra.mxu0 0.0
    %791 = vmatprep.subr.mxu0 0.0
    %792 = vmatpush1.msra.mxu0 0.0
    %793 = vmatprep.subr.mxu0 0.0
    %794 = vmatpush1.msra.mxu0 0.0
    %795 = vmatprep.subr.mxu0 0.0
    %796 = vmatpush1.msra.mxu0 0.0
    %797 = vmatprep.subr.mxu0 0.0
    %798 = vmatpush1.msra.mxu0 0.0
    %799 = vmatprep.subr.mxu0 0.0
    %800 = vmatpush1.msra.mxu0 0.0
    %801 = vmatprep.subr.mxu0 0.0
    %802 = vmatpush1.msra.mxu0 0.0
    %803 = vmatprep.subr.mxu0 0.0
    %804 = vmatpush1.msra.mxu0 0.0
    %805 = vmatprep.subr.mxu0 0.0
    %806 = vmatpush1.msra.mxu0 0.0
    %807 = vmatprep.subr.mxu0 0.0
    %808 = vmatpush1.msra.mxu0 0.0
    %809 = vmatprep.subr.mxu0 0.0
    %810 = vmatpush1.msra.mxu0 0.0
    %811 = vmatprep.subr.mxu0 0.0
    %812 = vmatpush1.msra.mxu0 0.0
    %813 = vmatprep.subr.mxu0 0.0
    %814 = vmatpush1.msra.mxu0 0.0
    %815 = vmatprep.subr.mxu0 0.0
    %816 = vmatpush1.msra.mxu0 0.0
    %817 = vmatprep.subr.mxu0 0.0
    %818 = vmatpush1.msra.mxu0 0.0
    %819 = vmatprep.subr.mxu0 0.0
    %820 = vmatpush1.msra.mxu0 0.0
    %821 = vmatprep.mubr.f32.mxu0 0.0
    %v822 = vand.u32 %v87, 4294901760
    %823 = vmatmul.mubr.f32.gmra.mrb[0].mxu0 %v822
    %v824 = vpop.f32.mrb[0].mxu0
    %v825 = vadd.f32 %v710, %v824
    %v826 = vpop.f32.mrb[0].mxu0
    %827 = vmatprep.mubr.f32.mxu0 0.0
    %v828 = vand.u32 %v90, 4294901760
    %829 = vmatmul.mubr.f32.gmra.mrb[0].mxu0 %v828
    %v830 = vpop.f32.mrb[0].mxu0
    %v831 = vadd.f32 %v716, %v830
    %v832 = vpop.f32.mrb[0].mxu0
    %833 = vmatprep.mubr.f32.mxu0 0.0
    %v834 = vand.u32 %v93, 4294901760
    %835 = vmatmul.mubr.f32.gmra.mrb[0].mxu0 %v834
    %v836 = vpop.f32.mrb[0].mxu0
    %v837 = vadd.f32 %v722, %v836
    %v838 = vpop.f32.mrb[0].mxu0
    %839 = vmatprep.mubr.f32.mxu0 0.0
    %v840 = vand.u32 %v96, 4294901760
    %841 = vmatmul.mubr.f32.gmra.mrb[0].mxu0 %v840
    %v842 = vpop.f32.mrb[0].mxu0
    %v843 = vadd.f32 %v728, %v842
    %v844 = vpop.f32.mrb[0].mxu0
    %845 = vmatprep.mubr.f32.mxu0 0.0
    %v846 = vand.u32 %v99, 4294901760
    %847 = vmatmul.mubr.f32.gmra.mrb[0].mxu0 %v846
    %v848 = vpop.f32.mrb[0].mxu0
    %v849 = vadd.f32 %v734, %v848
    %v850 = vpop.f32.mrb[0].mxu0
    %851 = vmatprep.mubr.f32.mxu0 0.0
    %v852 = vand.u32 %v102, 4294901760
    %853 = vmatmul.mubr.f32.gmra.mrb[0].mxu0 %v852
    %v854 = vpop.f32.mrb[0].mxu0
    %v855 = vadd.f32 %v740, %v854
    %v856 = vpop.f32.mrb[0].mxu0
    %857 = vmatprep.mubr.f32.mxu0 0.0
    %v858 = vand.u32 %v105, 4294901760
    %859 = vmatmul.mubr.f32.gmra.mrb[0].mxu0 %v858
    %v860 = vpop.f32.mrb[0].mxu0
    %v861 = vadd.f32 %v746, %v860
    %v862 = vpop.f32.mrb[0].mxu0
    %863 = vmatprep.mubr.f32.mxu0 0.0
    %v864 = vand.u32 %v108, 4294901760
    %865 = vmatmul.mubr.f32.gmra.mrb[0].mxu0 %v864
    %v866 = vpop.f32.mrb[0].mxu0
    %v867 = vadd.f32 %v752, %v866
    %v868 = vpop.f32.mrb[0].mxu0
    %869 = vdwg.mxu0
    %v870 = vmax.f32 %v825, 0.0
    %v871 = vmax.f32 %v831, 0.0
    %v872 = vmax.f32 %v837, 0.0
    %v873 = vmax.f32 %v843, 0.0
    %v874 = vmax.f32 %v849, 0.0
    %v875 = vmax.f32 %v855, 0.0
    %v876 = vmax.f32 %v861, 0.0
    %v877 = vmax.f32 %v867, 0.0
    %v878 = vld [vmem:[%s3] sm:$0xff]
    %v879 = vld [vmem:[%s3 + $0x8] sm:$0xff]
    %v880 = vld [vmem:[%s3 + $0x10] sm:$0xff]
    %v881 = vld [vmem:[%s3 + $0x18] sm:$0xff]
    %v882 = vld [vmem:[%s4] sm:$0xff]
    %v883 = vld [vmem:[%s4 + $0x8] sm:$0xff]
    %v884 = vld [vmem:[%s4 + $0x10] sm:$0xff]
    %v885 = vld [vmem:[%s4 + $0x18] sm:$0xff]
    %887 = vset.pattern.permute.xlu0 0
    %888 = vperm.xlu0 %887, %v882
    %v889 = vpop.permute.xlu0 %888
    %892 = vset.pattern.permute.xlu0 0
    %893 = vperm.xlu0 %892, %v883
    %v894 = vpop.permute.xlu0 %893
    %897 = vset.pattern.permute.xlu0 0
    %898 = vperm.xlu0 %897, %v884
    %v899 = vpop.permute.xlu0 %898
    %902 = vset.pattern.permute.xlu0 0
    %903 = vperm.xlu0 %902, %v885
    %v904 = vpop.permute.xlu0 %903
    %vm906 = vcmask 523264
    %v908 = vsel %vm906, %v878, 0
    %v911 = vsel %vm906, %v879, 0
    %v914 = vsel %vm906, %v880, 0
    %v917 = vsel %vm906, %v881, 0
    %919 = vmatprep.subr.mxu0 0.0
    %v920 = vand.u32 %v870, 4294901760
    %921 = vmatpush1.msra.mxu0 %v920
    %922 = vmatprep.subr.mxu0 0.0
    %v923 = vand.u32 %v871, 4294901760
    %924 = vmatpush1.msra.mxu0 %v923
    %925 = vmatprep.subr.mxu0 0.0
    %v926 = vand.u32 %v872, 4294901760
    %927 = vmatpush1.msra.mxu0 %v926
    %928 = vmatprep.subr.mxu0 0.0
    %v929 = vand.u32 %v873, 4294901760
    %930 = vmatpush1.msra.mxu0 %v929
    %931 = vmatprep.subr.mxu0 0.0
    %v932 = vand.u32 %v874, 4294901760
    %933 = vmatpush1.msra.mxu0 %v932
    %934 = vmatprep.subr.mxu0 0.0
    %v935 = vand.u32 %v875, 4294901760
    %936 = vmatpush1.msra.mxu0 %v935
    %937 = vmatprep.subr.mxu0 0.0
    %v938 = vand.u32 %v876, 4294901760
    %939 = vmatpush1.msra.mxu0 %v938
    %940 = vmatprep.subr.mxu0 0.0
    %v941 = vand.u32 %v877, 4294901760
    %942 = vmatpush1.msra.mxu0 %v941
    %943 = vmatprep.subr.mxu0 0.0
    %944 = vmatpush1.msra.mxu0 0.0
    %945 = vmatprep.subr.mxu0 0.0
    %946 = vmatpush1.msra.mxu0 0.0
    %947 = vmatprep.subr.mxu0 0.0
    %948 = vmatpush1.msra.mxu0 0.0
    %949 = vmatprep.subr.mxu0 0.0
    %950 = vmatpush1.msra.mxu0 0.0
    %951 = vmatprep.subr.mxu0 0.0
    %952 = vmatpush1.msra.mxu0 0.0
    %953 = vmatprep.subr.mxu0 0.0
    %954 = vmatpush1.msra.mxu0 0.0
    %955 = vmatprep.subr.mxu0 0.0
    %956 = vmatpush1.msra.mxu0 0.0
    %957 = vmatprep.subr.mxu0 0.0
    %958 = vmatpush1.msra.mxu0 0.0
    %959 = vmatprep.subr.mxu0 0.0
    %960 = vmatpush1.msra.mxu0 0.0
    %961 = vmatprep.subr.mxu0 0.0
    %962 = vmatpush1.msra.mxu0 0.0
    %963 = vmatprep.subr.mxu0 0.0
    %964 = vmatpush1.msra.mxu0 0.0
    %965 = vmatprep.subr.mxu0 0.0
    %966 = vmatpush1.msra.mxu0 0.0
    %967 = vmatprep.subr.mxu0 0.0
    %968 = vmatpush1.msra.mxu0 0.0
    %969 = vmatprep.subr.mxu0 0.0
    %970 = vmatpush1.msra.mxu0 0.0
    %971 = vmatprep.subr.mxu0 0.0
    %972 = vmatpush1.msra.mxu0 0.0
    %973 = vmatprep.subr.mxu0 0.0
    %974 = vmatpush1.msra.mxu0 0.0
    %975 = vmatprep.subr.mxu0 0.0
    %976 = vmatpush1.msra.mxu0 0.0
    %977 = vmatprep.subr.mxu0 0.0
    %978 = vmatpush1.msra.mxu0 0.0
    %979 = vmatprep.subr.mxu0 0.0
    %980 = vmatpush1.msra.mxu0 0.0
    %981 = vmatprep.subr.mxu0 0.0
    %982 = vmatpush1.msra.mxu0 0.0
    %983 = vmatprep.subr.mxu0 0.0
    %984 = vmatpush1.msra.mxu0 0.0
    %985 = vmatprep.subr.mxu0 0.0
    %986 = vmatpush1.msra.mxu0 0.0
    %987 = vmatprep.subr.mxu0 0.0
    %988 = vmatpush1.msra.mxu0 0.0
    %989 = vmatprep.subr.mxu0 0.0
    %990 = vmatpush1.msra.mxu0 0.0
    %991 = vmatprep.mubr.f32.mxu0 0.0
    %v992 = vand.u32 %v908, 4294901760
    %v993 = vsub.f32 %v908, %v992
    %v994 = vand.u32 %v993, 4294901760
    %v995 = vsub.f32 %v993, %v994
    %v996 = vand.u32 %v995, 4294901760
    %997 = vmatmul.mubr.f32.gmra.mrb[0].mxu0 %v996
    %v998 = vpop.f32.mrb[0].mxu0
    %v999 = vadd.f32 %v889, %v998
    %v1000 = vpop.f32.mrb[0].mxu0
    %1001 = vmatprep.mubr.f32.mxu0 0.0
    %v1002 = vand.u32 %v911, 4294901760
    %v1003 = vsub.f32 %v911, %v1002
    %v1004 = vand.u32 %v1003, 4294901760
    %v1005 = vsub.f32 %v1003, %v1004
    %v1006 = vand.u32 %v1005, 4294901760
    %1007 = vmatmul.mubr.f32.gmra.mrb[0].mxu0 %v1006
    %v1008 = vpop.f32.mrb[0].mxu0
    %v1009 = vadd.f32 %v894, %v1008
    %v1010 = vpop.f32.mrb[0].mxu0
    %1011 = vmatprep.mubr.f32.mxu0 0.0
    %v1012 = vand.u32 %v914, 4294901760
    %v1013 = vsub.f32 %v914, %v1012
    %v1014 = vand.u32 %v1013, 4294901760
    %v1015 = vsub.f32 %v1013, %v1014
    %v1016 = vand.u32 %v1015, 4294901760
    %1017 = vmatmul.mubr.f32.gmra.mrb[0].mxu0 %v1016
    %v1018 = vpop.f32.mrb[0].mxu0
    %v1019 = vadd.f32 %v899, %v1018
    %v1020 = vpop.f32.mrb[0].mxu0
    %1021 = vmatprep.mubr.f32.mxu0 0.0
    %v1022 = vand.u32 %v917, 4294901760
    %v1023 = vsub.f32 %v917, %v1022
    %v1024 = vand.u32 %v1023, 4294901760
    %v1025 = vsub.f32 %v1023, %v1024
    %v1026 = vand.u32 %v1025, 4294901760
    %1027 = vmatmul.mubr.f32.gmra.mrb[0].mxu0 %v1026
    %v1028 = vpop.f32.mrb[0].mxu0
    %v1029 = vadd.f32 %v904, %v1028
    %v1030 = vpop.f32.mrb[0].mxu0
    %1031 = vdwg.mxu0
    %1032 = vmatprep.subr.mxu0 0.0
    %v1033 = vand.u32 %v870, 4294901760
    %v1034 = vsub.f32 %v870, %v1033
    %v1035 = vand.u32 %v1034, 4294901760
    %v1036 = vsub.f32 %v1034, %v1035
    %v1037 = vand.u32 %v1036, 4294901760
    %1038 = vmatpush1.msra.mxu0 %v1037
    %1039 = vmatprep.subr.mxu0 0.0
    %v1040 = vand.u32 %v871, 4294901760
    %v1041 = vsub.f32 %v871, %v1040
    %v1042 = vand.u32 %v1041, 4294901760
    %v1043 = vsub.f32 %v1041, %v1042
    %v1044 = vand.u32 %v1043, 4294901760
    %1045 = vmatpush1.msra.mxu0 %v1044
    %1046 = vmatprep.subr.mxu0 0.0
    %v1047 = vand.u32 %v872, 4294901760
    %v1048 = vsub.f32 %v872, %v1047
    %v1049 = vand.u32 %v1048, 4294901760
    %v1050 = vsub.f32 %v1048, %v1049
    %v1051 = vand.u32 %v1050, 4294901760
    %1052 = vmatpush1.msra.mxu0 %v1051
    %1053 = vmatprep.subr.mxu0 0.0
    %v1054 = vand.u32 %v873, 4294901760
    %v1055 = vsub.f32 %v873, %v1054
    %v1056 = vand.u32 %v1055, 4294901760
    %v1057 = vsub.f32 %v1055, %v1056
    %v1058 = vand.u32 %v1057, 4294901760
    %1059 = vmatpush1.msra.mxu0 %v1058
    %1060 = vmatprep.subr.mxu0 0.0
    %v1061 = vand.u32 %v874, 4294901760
    %v1062 = vsub.f32 %v874, %v1061
    %v1063 = vand.u32 %v1062, 4294901760
    %v1064 = vsub.f32 %v1062, %v1063
    %v1065 = vand.u32 %v1064, 4294901760
    %1066 = vmatpush1.msra.mxu0 %v1065
    %1067 = vmatprep.subr.mxu0 0.0
    %v1068 = vand.u32 %v875, 4294901760
    %v1069 = vsub.f32 %v875, %v1068
    %v1070 = vand.u32 %v1069, 4294901760
    %v1071 = vsub.f32 %v1069, %v1070
    %v1072 = vand.u32 %v1071, 4294901760
    %1073 = vmatpush1.msra.mxu0 %v1072
    %1074 = vmatprep.subr.mxu0 0.0
    %v1075 = vand.u32 %v876, 4294901760
    %v1076 = vsub.f32 %v876, %v1075
    %v1077 = vand.u32 %v1076, 4294901760
    %v1078 = vsub.f32 %v1076, %v1077
    %v1079 = vand.u32 %v1078, 4294901760
    %1080 = vmatpush1.msra.mxu0 %v1079
    %1081 = vmatprep.subr.mxu0 0.0
    %v1082 = vand.u32 %v877, 4294901760
    %v1083 = vsub.f32 %v877, %v1082
    %v1084 = vand.u32 %v1083, 4294901760
    %v1085 = vsub.f32 %v1083, %v1084
    %v1086 = vand.u32 %v1085, 4294901760
    %1087 = vmatpush1.msra.mxu0 %v1086
    %1088 = vmatprep.subr.mxu0 0.0
    %1089 = vmatpush1.msra.mxu0 0.0
    %1090 = vmatprep.subr.mxu0 0.0
    %1091 = vmatpush1.msra.mxu0 0.0
    %1092 = vmatprep.subr.mxu0 0.0
    %1093 = vmatpush1.msra.mxu0 0.0
    %1094 = vmatprep.subr.mxu0 0.0
    %1095 = vmatpush1.msra.mxu0 0.0
    %1096 = vmatprep.subr.mxu0 0.0
    %1097 = vmatpush1.msra.mxu0 0.0
    %1098 = vmatprep.subr.mxu0 0.0
    %1099 = vmatpush1.msra.mxu0 0.0
    %1100 = vmatprep.subr.mxu0 0.0
    %1101 = vmatpush1.msra.mxu0 0.0
    %1102 = vmatprep.subr.mxu0 0.0
    %1103 = vmatpush1.msra.mxu0 0.0
    %1104 = vmatprep.subr.mxu0 0.0
    %1105 = vmatpush1.msra.mxu0 0.0
    %1106 = vmatprep.subr.mxu0 0.0
    %1107 = vmatpush1.msra.mxu0 0.0
    %1108 = vmatprep.subr.mxu0 0.0
    %1109 = vmatpush1.msra.mxu0 0.0
    %1110 = vmatprep.subr.mxu0 0.0
    %1111 = vmatpush1.msra.mxu0 0.0
    %1112 = vmatprep.subr.mxu0 0.0
    %1113 = vmatpush1.msra.mxu0 0.0
    %1114 = vmatprep.subr.mxu0 0.0
    %1115 = vmatpush1.msra.mxu0 0.0
    %1116 = vmatprep.subr.mxu0 0.0
    %1117 = vmatpush1.msra.mxu0 0.0
    %1118 = vmatprep.subr.mxu0 0.0
    %1119 = vmatpush1.msra.mxu0 0.0
    %1120 = vmatprep.subr.mxu0 0.0
    %1121 = vmatpush1.msra.mxu0 0.0
    %1122 = vmatprep.subr.mxu0 0.0
    %1123 = vmatpush1.msra.mxu0 0.0
    %1124 = vmatprep.subr.mxu0 0.0
    %1125 = vmatpush1.msra.mxu0 0.0
    %1126 = vmatprep.subr.mxu0 0.0
    %1127 = vmatpush1.msra.mxu0 0.0
    %1128 = vmatprep.subr.mxu0 0.0
    %1129 = vmatpush1.msra.mxu0 0.0
    %1130 = vmatprep.subr.mxu0 0.0
    %1131 = vmatpush1.msra.mxu0 0.0
    %1132 = vmatprep.subr.mxu0 0.0
    %1133 = vmatpush1.msra.mxu0 0.0
    %1134 = vmatprep.subr.mxu0 0.0
    %1135 = vmatpush1.msra.mxu0 0.0
    %1136 = vmatprep.mubr.f32.mxu0 0.0
    %v1137 = vand.u32 %v908, 4294901760
    %1138 = vmatmul.mubr.f32.gmra.mrb[0].mxu0 %v1137
    %v1139 = vpop.f32.mrb[0].mxu0
    %v1140 = vadd.f32 %v999, %v1139
    %v1141 = vpop.f32.mrb[0].mxu0
    %1142 = vmatprep.mubr.f32.mxu0 0.0
    %v1143 = vand.u32 %v911, 4294901760
    %1144 = vmatmul.mubr.f32.gmra.mrb[0].mxu0 %v1143
    %v1145 = vpop.f32.mrb[0].mxu0
    %v1146 = vadd.f32 %v1009, %v1145
    %v1147 = vpop.f32.mrb[0].mxu0
    %1148 = vmatprep.mubr.f32.mxu0 0.0
    %v1149 = vand.u32 %v914, 4294901760
    %1150 = vmatmul.mubr.f32.gmra.mrb[0].mxu0 %v1149
    %v1151 = vpop.f32.mrb[0].mxu0
    %v1152 = vadd.f32 %v1019, %v1151
    %v1153 = vpop.f32.mrb[0].mxu0
    %1154 = vmatprep.mubr.f32.mxu0 0.0
    %v1155 = vand.u32 %v917, 4294901760
    %1156 = vmatmul.mubr.f32.gmra.mrb[0].mxu0 %v1155
    %v1157 = vpop.f32.mrb[0].mxu0
    %v1158 = vadd.f32 %v1029, %v1157
    %v1159 = vpop.f32.mrb[0].mxu0
    %1160 = vdwg.mxu0
    %1161 = vmatprep.subr.mxu0 0.0
    %v1162 = vand.u32 %v870, 4294901760
    %v1163 = vsub.f32 %v870, %v1162
    %1164 = vmatpush1.msra.mxu0 %v1163
    %1165 = vmatprep.subr.mxu0 0.0
    %v1166 = vand.u32 %v871, 4294901760
    %v1167 = vsub.f32 %v871, %v1166
    %1168 = vmatpush1.msra.mxu0 %v1167
    %1169 = vmatprep.subr.mxu0 0.0
    %v1170 = vand.u32 %v872, 4294901760
    %v1171 = vsub.f32 %v872, %v1170
    %1172 = vmatpush1.msra.mxu0 %v1171
    %1173 = vmatprep.subr.mxu0 0.0
    %v1174 = vand.u32 %v873, 4294901760
    %v1175 = vsub.f32 %v873, %v1174
    %1176 = vmatpush1.msra.mxu0 %v1175
    %1177 = vmatprep.subr.mxu0 0.0
    %v1178 = vand.u32 %v874, 4294901760
    %v1179 = vsub.f32 %v874, %v1178
    %1180 = vmatpush1.msra.mxu0 %v1179
    %1181 = vmatprep.subr.mxu0 0.0
    %v1182 = vand.u32 %v875, 4294901760
    %v1183 = vsub.f32 %v875, %v1182
    %1184 = vmatpush1.msra.mxu0 %v1183
    %1185 = vmatprep.subr.mxu0 0.0
    %v1186 = vand.u32 %v876, 4294901760
    %v1187 = vsub.f32 %v876, %v1186
    %1188 = vmatpush1.msra.mxu0 %v1187
    %1189 = vmatprep.subr.mxu0 0.0
    %v1190 = vand.u32 %v877, 4294901760
    %v1191 = vsub.f32 %v877, %v1190
    %1192 = vmatpush1.msra.mxu0 %v1191
    %1193 = vmatprep.subr.mxu0 0.0
    %1194 = vmatpush1.msra.mxu0 0.0
    %1195 = vmatprep.subr.mxu0 0.0
    %1196 = vmatpush1.msra.mxu0 0.0
    %1197 = vmatprep.subr.mxu0 0.0
    %1198 = vmatpush1.msra.mxu0 0.0
    %1199 = vmatprep.subr.mxu0 0.0
    %1200 = vmatpush1.msra.mxu0 0.0
    %1201 = vmatprep.subr.mxu0 0.0
    %1202 = vmatpush1.msra.mxu0 0.0
    %1203 = vmatprep.subr.mxu0 0.0
    %1204 = vmatpush1.msra.mxu0 0.0
    %1205 = vmatprep.subr.mxu0 0.0
    %1206 = vmatpush1.msra.mxu0 0.0
    %1207 = vmatprep.subr.mxu0 0.0
    %1208 = vmatpush1.msra.mxu0 0.0
    %1209 = vmatprep.subr.mxu0 0.0
    %1210 = vmatpush1.msra.mxu0 0.0
    %1211 = vmatprep.subr.mxu0 0.0
    %1212 = vmatpush1.msra.mxu0 0.0
    %1213 = vmatprep.subr.mxu0 0.0
    %1214 = vmatpush1.msra.mxu0 0.0
    %1215 = vmatprep.subr.mxu0 0.0
    %1216 = vmatpush1.msra.mxu0 0.0
    %1217 = vmatprep.subr.mxu0 0.0
    %1218 = vmatpush1.msra.mxu0 0.0
    %1219 = vmatprep.subr.mxu0 0.0
    %1220 = vmatpush1.msra.mxu0 0.0
    %1221 = vmatprep.subr.mxu0 0.0
    %1222 = vmatpush1.msra.mxu0 0.0
    %1223 = vmatprep.subr.mxu0 0.0
    %1224 = vmatpush1.msra.mxu0 0.0
    %1225 = vmatprep.subr.mxu0 0.0
    %1226 = vmatpush1.msra.mxu0 0.0
    %1227 = vmatprep.subr.mxu0 0.0
    %1228 = vmatpush1.msra.mxu0 0.0
    %1229 = vmatprep.subr.mxu0 0.0
    %1230 = vmatpush1.msra.mxu0 0.0
    %1231 = vmatprep.subr.mxu0 0.0
    %1232 = vmatpush1.msra.mxu0 0.0
    %1233 = vmatprep.subr.mxu0 0.0
    %1234 = vmatpush1.msra.mxu0 0.0
    %1235 = vmatprep.subr.mxu0 0.0
    %1236 = vmatpush1.msra.mxu0 0.0
    %1237 = vmatprep.subr.mxu0 0.0
    %1238 = vmatpush1.msra.mxu0 0.0
    %1239 = vmatprep.subr.mxu0 0.0
    %1240 = vmatpush1.msra.mxu0 0.0
    %1241 = vmatprep.mubr.f32.mxu0 0.0
    %v1242 = vand.u32 %v908, 4294901760
    %v1243 = vsub.f32 %v908, %v1242
    %1244 = vmatmul.mubr.f32.gmra.mrb[0].mxu0 %v1243
    %v1245 = vpop.f32.mrb[0].mxu0
    %v1246 = vadd.f32 %v1140, %v1245
    %v1247 = vpop.f32.mrb[0].mxu0
    %1248 = vmatprep.mubr.f32.mxu0 0.0
    %v1249 = vand.u32 %v911, 4294901760
    %v1250 = vsub.f32 %v911, %v1249
    %1251 = vmatmul.mubr.f32.gmra.mrb[0].mxu0 %v1250
    %v1252 = vpop.f32.mrb[0].mxu0
    %v1253 = vadd.f32 %v1146, %v1252
    %v1254 = vpop.f32.mrb[0].mxu0
    %1255 = vmatprep.mubr.f32.mxu0 0.0
    %v1256 = vand.u32 %v914, 4294901760
    %v1257 = vsub.f32 %v914, %v1256
    %1258 = vmatmul.mubr.f32.gmra.mrb[0].mxu0 %v1257
    %v1259 = vpop.f32.mrb[0].mxu0
    %v1260 = vadd.f32 %v1152, %v1259
    %v1261 = vpop.f32.mrb[0].mxu0
    %1262 = vmatprep.mubr.f32.mxu0 0.0
    %v1263 = vand.u32 %v917, 4294901760
    %v1264 = vsub.f32 %v917, %v1263
    %1265 = vmatmul.mubr.f32.gmra.mrb[0].mxu0 %v1264
    %v1266 = vpop.f32.mrb[0].mxu0
    %v1267 = vadd.f32 %v1158, %v1266
    %v1268 = vpop.f32.mrb[0].mxu0
    %1269 = vdwg.mxu0
    %1270 = vmatprep.subr.mxu0 0.0
    %v1271 = vand.u32 %v870, 4294901760
    %1272 = vmatpush1.msra.mxu0 %v1271
    %1273 = vmatprep.subr.mxu0 0.0
    %v1274 = vand.u32 %v871, 4294901760
    %1275 = vmatpush1.msra.mxu0 %v1274
    %1276 = vmatprep.subr.mxu0 0.0
    %v1277 = vand.u32 %v872, 4294901760
    %1278 = vmatpush1.msra.mxu0 %v1277
    %1279 = vmatprep.subr.mxu0 0.0
    %v1280 = vand.u32 %v873, 4294901760
    %1281 = vmatpush1.msra.mxu0 %v1280
    %1282 = vmatprep.subr.mxu0 0.0
    %v1283 = vand.u32 %v874, 4294901760
    %1284 = vmatpush1.msra.mxu0 %v1283
    %1285 = vmatprep.subr.mxu0 0.0
    %v1286 = vand.u32 %v875, 4294901760
    %1287 = vmatpush1.msra.mxu0 %v1286
    %1288 = vmatprep.subr.mxu0 0.0
    %v1289 = vand.u32 %v876, 4294901760
    %1290 = vmatpush1.msra.mxu0 %v1289
    %1291 = vmatprep.subr.mxu0 0.0
    %v1292 = vand.u32 %v877, 4294901760
    %1293 = vmatpush1.msra.mxu0 %v1292
    %1294 = vmatprep.subr.mxu0 0.0
    %1295 = vmatpush1.msra.mxu0 0.0
    %1296 = vmatprep.subr.mxu0 0.0
    %1297 = vmatpush1.msra.mxu0 0.0
    %1298 = vmatprep.subr.mxu0 0.0
    %1299 = vmatpush1.msra.mxu0 0.0
    %1300 = vmatprep.subr.mxu0 0.0
    %1301 = vmatpush1.msra.mxu0 0.0
    %1302 = vmatprep.subr.mxu0 0.0
    %1303 = vmatpush1.msra.mxu0 0.0
    %1304 = vmatprep.subr.mxu0 0.0
    %1305 = vmatpush1.msra.mxu0 0.0
    %1306 = vmatprep.subr.mxu0 0.0
    %1307 = vmatpush1.msra.mxu0 0.0
    %1308 = vmatprep.subr.mxu0 0.0
    %1309 = vmatpush1.msra.mxu0 0.0
    %1310 = vmatprep.subr.mxu0 0.0
    %1311 = vmatpush1.msra.mxu0 0.0
    %1312 = vmatprep.subr.mxu0 0.0
    %1313 = vmatpush1.msra.mxu0 0.0
    %1314 = vmatprep.subr.mxu0 0.0
    %1315 = vmatpush1.msra.mxu0 0.0
    %1316 = vmatprep.subr.mxu0 0.0
    %1317 = vmatpush1.msra.mxu0 0.0
    %1318 = vmatprep.subr.mxu0 0.0
    %1319 = vmatpush1.msra.mxu0 0.0
    %1320 = vmatprep.subr.mxu0 0.0
    %1321 = vmatpush1.msra.mxu0 0.0
    %1322 = vmatprep.subr.mxu0 0.0
    %1323 = vmatpush1.msra.mxu0 0.0
    %1324 = vmatprep.subr.mxu0 0.0
    %1325 = vmatpush1.msra.mxu0 0.0
    %1326 = vmatprep.subr.mxu0 0.0
    %1327 = vmatpush1.msra.mxu0 0.0
    %1328 = vmatprep.subr.mxu0 0.0
    %1329 = vmatpush1.msra.mxu0 0.0
    %1330 = vmatprep.subr.mxu0 0.0
    %1331 = vmatpush1.msra.mxu0 0.0
    %1332 = vmatprep.subr.mxu0 0.0
    %1333 = vmatpush1.msra.mxu0 0.0
    %1334 = vmatprep.subr.mxu0 0.0
    %1335 = vmatpush1.msra.mxu0 0.0
    %1336 = vmatprep.subr.mxu0 0.0
    %1337 = vmatpush1.msra.mxu0 0.0
    %1338 = vmatprep.subr.mxu0 0.0
    %1339 = vmatpush1.msra.mxu0 0.0
    %1340 = vmatprep.subr.mxu0 0.0
    %1341 = vmatpush1.msra.mxu0 0.0
    %1342 = vmatprep.mubr.f32.mxu0 0.0
    %v1343 = vand.u32 %v908, 4294901760
    %v1344 = vsub.f32 %v908, %v1343
    %v1345 = vand.u32 %v1344, 4294901760
    %1346 = vmatmul.mubr.f32.gmra.mrb[0].mxu0 %v1345
    %v1347 = vpop.f32.mrb[0].mxu0
    %v1348 = vadd.f32 %v1246, %v1347
    %v1349 = vpop.f32.mrb[0].mxu0
    %1350 = vmatprep.mubr.f32.mxu0 0.0
    %v1351 = vand.u32 %v911, 4294901760
    %v1352 = vsub.f32 %v911, %v1351
    %v1353 = vand.u32 %v1352, 4294901760
    %1354 = vmatmul.mubr.f32.gmra.mrb[0].mxu0 %v1353
    %v1355 = vpop.f32.mrb[0].mxu0
    %v1356 = vadd.f32 %v1253, %v1355
    %v1357 = vpop.f32.mrb[0].mxu0
    %1358 = vmatprep.mubr.f32.mxu0 0.0
    %v1359 = vand.u32 %v914, 4294901760
    %v1360 = vsub.f32 %v914, %v1359
    %v1361 = vand.u32 %v1360, 4294901760
    %1362 = vmatmul.mubr.f32.gmra.mrb[0].mxu0 %v1361
    %v1363 = vpop.f32.mrb[0].mxu0
    %v1364 = vadd.f32 %v1260, %v1363
    %v1365 = vpop.f32.mrb[0].mxu0
    %1366 = vmatprep.mubr.f32.mxu0 0.0
    %v1367 = vand.u32 %v917, 4294901760
    %v1368 = vsub.f32 %v917, %v1367
    %v1369 = vand.u32 %v1368, 4294901760
    %1370 = vmatmul.mubr.f32.gmra.mrb[0].mxu0 %v1369
    %v1371 = vpop.f32.mrb[0].mxu0
    %v1372 = vadd.f32 %v1267, %v1371
    %v1373 = vpop.f32.mrb[0].mxu0
    %1374 = vdwg.mxu0
    %1375 = vmatprep.subr.mxu0 0.0
    %v1376 = vand.u32 %v870, 4294901760
    %v1377 = vsub.f32 %v870, %v1376
    %v1378 = vand.u32 %v1377, 4294901760
    %1379 = vmatpush1.msra.mxu0 %v1378
    %1380 = vmatprep.subr.mxu0 0.0
    %v1381 = vand.u32 %v871, 4294901760
    %v1382 = vsub.f32 %v871, %v1381
    %v1383 = vand.u32 %v1382, 4294901760
    %1384 = vmatpush1.msra.mxu0 %v1383
    %1385 = vmatprep.subr.mxu0 0.0
    %v1386 = vand.u32 %v872, 4294901760
    %v1387 = vsub.f32 %v872, %v1386
    %v1388 = vand.u32 %v1387, 4294901760
    %1389 = vmatpush1.msra.mxu0 %v1388
    %1390 = vmatprep.subr.mxu0 0.0
    %v1391 = vand.u32 %v873, 4294901760
    %v1392 = vsub.f32 %v873, %v1391
    %v1393 = vand.u32 %v1392, 4294901760
    %1394 = vmatpush1.msra.mxu0 %v1393
    %1395 = vmatprep.subr.mxu0 0.0
    %v1396 = vand.u32 %v874, 4294901760
    %v1397 = vsub.f32 %v874, %v1396
    %v1398 = vand.u32 %v1397, 4294901760
    %1399 = vmatpush1.msra.mxu0 %v1398
    %1400 = vmatprep.subr.mxu0 0.0
    %v1401 = vand.u32 %v875, 4294901760
    %v1402 = vsub.f32 %v875, %v1401
    %v1403 = vand.u32 %v1402, 4294901760
    %1404 = vmatpush1.msra.mxu0 %v1403
    %1405 = vmatprep.subr.mxu0 0.0
    %v1406 = vand.u32 %v876, 4294901760
    %v1407 = vsub.f32 %v876, %v1406
    %v1408 = vand.u32 %v1407, 4294901760
    %1409 = vmatpush1.msra.mxu0 %v1408
    %1410 = vmatprep.subr.mxu0 0.0
    %v1411 = vand.u32 %v877, 4294901760
    %v1412 = vsub.f32 %v877, %v1411
    %v1413 = vand.u32 %v1412, 4294901760
    %1414 = vmatpush1.msra.mxu0 %v1413
    %1415 = vmatprep.subr.mxu0 0.0
    %1416 = vmatpush1.msra.mxu0 0.0
    %1417 = vmatprep.subr.mxu0 0.0
    %1418 = vmatpush1.msra.mxu0 0.0
    %1419 = vmatprep.subr.mxu0 0.0
    %1420 = vmatpush1.msra.mxu0 0.0
    %1421 = vmatprep.subr.mxu0 0.0
    %1422 = vmatpush1.msra.mxu0 0.0
    %1423 = vmatprep.subr.mxu0 0.0
    %1424 = vmatpush1.msra.mxu0 0.0
    %1425 = vmatprep.subr.mxu0 0.0
    %1426 = vmatpush1.msra.mxu0 0.0
    %1427 = vmatprep.subr.mxu0 0.0
    %1428 = vmatpush1.msra.mxu0 0.0
    %1429 = vmatprep.subr.mxu0 0.0
    %1430 = vmatpush1.msra.mxu0 0.0
    %1431 = vmatprep.subr.mxu0 0.0
    %1432 = vmatpush1.msra.mxu0 0.0
    %1433 = vmatprep.subr.mxu0 0.0
    %1434 = vmatpush1.msra.mxu0 0.0
    %1435 = vmatprep.subr.mxu0 0.0
    %1436 = vmatpush1.msra.mxu0 0.0
    %1437 = vmatprep.subr.mxu0 0.0
    %1438 = vmatpush1.msra.mxu0 0.0
    %1439 = vmatprep.subr.mxu0 0.0
    %1440 = vmatpush1.msra.mxu0 0.0
    %1441 = vmatprep.subr.mxu0 0.0
    %1442 = vmatpush1.msra.mxu0 0.0
    %1443 = vmatprep.subr.mxu0 0.0
    %1444 = vmatpush1.msra.mxu0 0.0
    %1445 = vmatprep.subr.mxu0 0.0
    %1446 = vmatpush1.msra.mxu0 0.0
    %1447 = vmatprep.subr.mxu0 0.0
    %1448 = vmatpush1.msra.mxu0 0.0
    %1449 = vmatprep.subr.mxu0 0.0
    %1450 = vmatpush1.msra.mxu0 0.0
    %1451 = vmatprep.subr.mxu0 0.0
    %1452 = vmatpush1.msra.mxu0 0.0
    %1453 = vmatprep.subr.mxu0 0.0
    %1454 = vmatpush1.msra.mxu0 0.0
    %1455 = vmatprep.subr.mxu0 0.0
    %1456 = vmatpush1.msra.mxu0 0.0
    %1457 = vmatprep.subr.mxu0 0.0
    %1458 = vmatpush1.msra.mxu0 0.0
    %1459 = vmatprep.subr.mxu0 0.0
    %1460 = vmatpush1.msra.mxu0 0.0
    %1461 = vmatprep.subr.mxu0 0.0
    %1462 = vmatpush1.msra.mxu0 0.0
    %1463 = vmatprep.mubr.f32.mxu0 0.0
    %v1464 = vand.u32 %v908, 4294901760
    %1465 = vmatmul.mubr.f32.gmra.mrb[0].mxu0 %v1464
    %v1466 = vpop.f32.mrb[0].mxu0
    %v1467 = vadd.f32 %v1348, %v1466
    %v1468 = vpop.f32.mrb[0].mxu0
    %1469 = vmatprep.mubr.f32.mxu0 0.0
    %v1470 = vand.u32 %v911, 4294901760
    %1471 = vmatmul.mubr.f32.gmra.mrb[0].mxu0 %v1470
    %v1472 = vpop.f32.mrb[0].mxu0
    %v1473 = vadd.f32 %v1356, %v1472
    %v1474 = vpop.f32.mrb[0].mxu0
    %1475 = vmatprep.mubr.f32.mxu0 0.0
    %v1476 = vand.u32 %v914, 4294901760
    %1477 = vmatmul.mubr.f32.gmra.mrb[0].mxu0 %v1476
    %v1478 = vpop.f32.mrb[0].mxu0
    %v1479 = vadd.f32 %v1364, %v1478
    %v1480 = vpop.f32.mrb[0].mxu0
    %1481 = vmatprep.mubr.f32.mxu0 0.0
    %v1482 = vand.u32 %v917, 4294901760
    %1483 = vmatmul.mubr.f32.gmra.mrb[0].mxu0 %v1482
    %v1484 = vpop.f32.mrb[0].mxu0
    %v1485 = vadd.f32 %v1372, %v1484
    %v1486 = vpop.f32.mrb[0].mxu0
    %1487 = vdwg.mxu0
    %1488 = vmatprep.subr.mxu0 0.0
    %v1489 = vand.u32 %v870, 4294901760
    %1490 = vmatpush1.msra.mxu0 %v1489
    %1491 = vmatprep.subr.mxu0 0.0
    %v1492 = vand.u32 %v871, 4294901760
    %1493 = vmatpush1.msra.mxu0 %v1492
    %1494 = vmatprep.subr.mxu0 0.0
    %v1495 = vand.u32 %v872, 4294901760
    %1496 = vmatpush1.msra.mxu0 %v1495
    %1497 = vmatprep.subr.mxu0 0.0
    %v1498 = vand.u32 %v873, 4294901760
    %1499 = vmatpush1.msra.mxu0 %v1498
    %1500 = vmatprep.subr.mxu0 0.0
    %v1501 = vand.u32 %v874, 4294901760
    %1502 = vmatpush1.msra.mxu0 %v1501
    %1503 = vmatprep.subr.mxu0 0.0
    %v1504 = vand.u32 %v875, 4294901760
    %1505 = vmatpush1.msra.mxu0 %v1504
    %1506 = vmatprep.subr.mxu0 0.0
    %v1507 = vand.u32 %v876, 4294901760
    %1508 = vmatpush1.msra.mxu0 %v1507
    %1509 = vmatprep.subr.mxu0 0.0
    %v1510 = vand.u32 %v877, 4294901760
    %1511 = vmatpush1.msra.mxu0 %v1510
    %1512 = vmatprep.subr.mxu0 0.0
    %1513 = vmatpush1.msra.mxu0 0.0
    %1514 = vmatprep.subr.mxu0 0.0
    %1515 = vmatpush1.msra.mxu0 0.0
    %1516 = vmatprep.subr.mxu0 0.0
    %1517 = vmatpush1.msra.mxu0 0.0
    %1518 = vmatprep.subr.mxu0 0.0
    %1519 = vmatpush1.msra.mxu0 0.0
    %1520 = vmatprep.subr.mxu0 0.0
    %1521 = vmatpush1.msra.mxu0 0.0
    %1522 = vmatprep.subr.mxu0 0.0
    %1523 = vmatpush1.msra.mxu0 0.0
    %1524 = vmatprep.subr.mxu0 0.0
    %1525 = vmatpush1.msra.mxu0 0.0
    %1526 = vmatprep.subr.mxu0 0.0
    %1527 = vmatpush1.msra.mxu0 0.0
    %1528 = vmatprep.subr.mxu0 0.0
    %1529 = vmatpush1.msra.mxu0 0.0
    %1530 = vmatprep.subr.mxu0 0.0
    %1531 = vmatpush1.msra.mxu0 0.0
    %1532 = vmatprep.subr.mxu0 0.0
    %1533 = vmatpush1.msra.mxu0 0.0
    %1534 = vmatprep.subr.mxu0 0.0
    %1535 = vmatpush1.msra.mxu0 0.0
    %1536 = vmatprep.subr.mxu0 0.0
    %1537 = vmatpush1.msra.mxu0 0.0
    %1538 = vmatprep.subr.mxu0 0.0
    %1539 = vmatpush1.msra.mxu0 0.0
    %1540 = vmatprep.subr.mxu0 0.0
    %1541 = vmatpush1.msra.mxu0 0.0
    %1542 = vmatprep.subr.mxu0 0.0
    %1543 = vmatpush1.msra.mxu0 0.0
    %1544 = vmatprep.subr.mxu0 0.0
    %1545 = vmatpush1.msra.mxu0 0.0
    %1546 = vmatprep.subr.mxu0 0.0
    %1547 = vmatpush1.msra.mxu0 0.0
    %1548 = vmatprep.subr.mxu0 0.0
    %1549 = vmatpush1.msra.mxu0 0.0
    %1550 = vmatprep.subr.mxu0 0.0
    %1551 = vmatpush1.msra.mxu0 0.0
    %1552 = vmatprep.subr.mxu0 0.0
    %1553 = vmatpush1.msra.mxu0 0.0
    %1554 = vmatprep.subr.mxu0 0.0
    %1555 = vmatpush1.msra.mxu0 0.0
    %1556 = vmatprep.subr.mxu0 0.0
    %1557 = vmatpush1.msra.mxu0 0.0
    %1558 = vmatprep.subr.mxu0 0.0
    %1559 = vmatpush1.msra.mxu0 0.0
    %1560 = vmatprep.mubr.f32.mxu0 0.0
    %v1561 = vand.u32 %v908, 4294901760
    %1562 = vmatmul.mubr.f32.gmra.mrb[0].mxu0 %v1561
    %v1563 = vpop.f32.mrb[0].mxu0
    %v1564 = vadd.f32 %v1467, %v1563
    %v1565 = vpop.f32.mrb[0].mxu0
    %1566 = vmatprep.mubr.f32.mxu0 0.0
    %v1567 = vand.u32 %v911, 4294901760
    %1568 = vmatmul.mubr.f32.gmra.mrb[0].mxu0 %v1567
    %v1569 = vpop.f32.mrb[0].mxu0
    %v1570 = vadd.f32 %v1473, %v1569
    %v1571 = vpop.f32.mrb[0].mxu0
    %1572 = vmatprep.mubr.f32.mxu0 0.0
    %v1573 = vand.u32 %v914, 4294901760
    %1574 = vmatmul.mubr.f32.gmra.mrb[0].mxu0 %v1573
    %v1575 = vpop.f32.mrb[0].mxu0
    %v1576 = vadd.f32 %v1479, %v1575
    %v1577 = vpop.f32.mrb[0].mxu0
    %1578 = vmatprep.mubr.f32.mxu0 0.0
    %v1579 = vand.u32 %v917, 4294901760
    %1580 = vmatmul.mubr.f32.gmra.mrb[0].mxu0 %v1579
    %v1581 = vpop.f32.mrb[0].mxu0
    %v1582 = vadd.f32 %v1485, %v1581
    %v1583 = vpop.f32.mrb[0].mxu0
    %1584 = vdwg.mxu0
    %v1585 = vmax.f32 %v1564, 0.0
    %v1586 = vmax.f32 %v1570, 0.0
    %v1587 = vmax.f32 %v1576, 0.0
    %v1588 = vmax.f32 %v1582, 0.0
    %v1589 = vld [vmem:[%s5] sm:$0xff]
    %v1590 = vld [vmem:[%s6] sm:$0xff]
    %1592 = vset.pattern.permute.xlu0 0
    %1593 = vperm.xlu0 %1592, %v1590
    %v1594 = vpop.permute.xlu0 %1593
    %vm1596 = vcmask 261120
    %v1598 = vsel %vm1596, %v1589, 0
    %1600 = vmatprep.subr.mxu0 0.0
    %v1601 = vand.u32 %v1585, 4294901760
    %1602 = vmatpush1.msra.mxu0 %v1601
    %1603 = vmatprep.subr.mxu0 0.0
    %v1604 = vand.u32 %v1586, 4294901760
    %1605 = vmatpush1.msra.mxu0 %v1604
    %1606 = vmatprep.subr.mxu0 0.0
    %v1607 = vand.u32 %v1587, 4294901760
    %1608 = vmatpush1.msra.mxu0 %v1607
    %1609 = vmatprep.subr.mxu0 0.0
    %v1610 = vand.u32 %v1588, 4294901760
    %1611 = vmatpush1.msra.mxu0 %v1610
    %1612 = vmatprep.subr.mxu0 0.0
    %1613 = vmatpush1.msra.mxu0 0.0
    %1614 = vmatprep.subr.mxu0 0.0
    %1615 = vmatpush1.msra.mxu0 0.0
    %1616 = vmatprep.subr.mxu0 0.0
    %1617 = vmatpush1.msra.mxu0 0.0
    %1618 = vmatprep.subr.mxu0 0.0
    %1619 = vmatpush1.msra.mxu0 0.0
    %1620 = vmatprep.subr.mxu0 0.0
    %1621 = vmatpush1.msra.mxu0 0.0
    %1622 = vmatprep.subr.mxu0 0.0
    %1623 = vmatpush1.msra.mxu0 0.0
    %1624 = vmatprep.subr.mxu0 0.0
    %1625 = vmatpush1.msra.mxu0 0.0
    %1626 = vmatprep.subr.mxu0 0.0
    %1627 = vmatpush1.msra.mxu0 0.0
    %1628 = vmatprep.subr.mxu0 0.0
    %1629 = vmatpush1.msra.mxu0 0.0
    %1630 = vmatprep.subr.mxu0 0.0
    %1631 = vmatpush1.msra.mxu0 0.0
    %1632 = vmatprep.subr.mxu0 0.0
    %1633 = vmatpush1.msra.mxu0 0.0
    %1634 = vmatprep.subr.mxu0 0.0
    %1635 = vmatpush1.msra.mxu0 0.0
    %1636 = vmatprep.subr.mxu0 0.0
    %1637 = vmatpush1.msra.mxu0 0.0
    %1638 = vmatprep.subr.mxu0 0.0
    %1639 = vmatpush1.msra.mxu0 0.0
    %1640 = vmatprep.subr.mxu0 0.0
    %1641 = vmatpush1.msra.mxu0 0.0
    %1642 = vmatprep.subr.mxu0 0.0
    %1643 = vmatpush1.msra.mxu0 0.0
    %1644 = vmatprep.subr.mxu0 0.0
    %1645 = vmatpush1.msra.mxu0 0.0
    %1646 = vmatprep.subr.mxu0 0.0
    %1647 = vmatpush1.msra.mxu0 0.0
    %1648 = vmatprep.subr.mxu0 0.0
    %1649 = vmatpush1.msra.mxu0 0.0
    %1650 = vmatprep.subr.mxu0 0.0
    %1651 = vmatpush1.msra.mxu0 0.0
    %1652 = vmatprep.subr.mxu0 0.0
    %1653 = vmatpush1.msra.mxu0 0.0
    %1654 = vmatprep.subr.mxu0 0.0
    %1655 = vmatpush1.msra.mxu0 0.0
    %1656 = vmatprep.subr.mxu0 0.0
    %1657 = vmatpush1.msra.mxu0 0.0
    %1658 = vmatprep.subr.mxu0 0.0
    %1659 = vmatpush1.msra.mxu0 0.0
    %1660 = vmatprep.subr.mxu0 0.0
    %1661 = vmatpush1.msra.mxu0 0.0
    %1662 = vmatprep.subr.mxu0 0.0
    %1663 = vmatpush1.msra.mxu0 0.0
    %1664 = vmatprep.subr.mxu0 0.0
    %1665 = vmatpush1.msra.mxu0 0.0
    %1666 = vmatprep.subr.mxu0 0.0
    %1667 = vmatpush1.msra.mxu0 0.0
    %1668 = vmatprep.mubr.f32.mxu0 0.0
    %v1669 = vand.u32 %v1598, 4294901760
    %v1670 = vsub.f32 %v1598, %v1669
    %v1671 = vand.u32 %v1670, 4294901760
    %v1672 = vsub.f32 %v1670, %v1671
    %v1673 = vand.u32 %v1672, 4294901760
    %1674 = vmatmul.mubr.f32.gmra.mrb[0].mxu0 %v1673
    %v1675 = vpop.f32.mrb[0].mxu0
    %v1676 = vadd.f32 %v1594, %v1675
    %v1677 = vpop.f32.mrb[0].mxu0
    %1678 = vdwg.mxu0
    %1679 = vmatprep.subr.mxu0 0.0
    %v1680 = vand.u32 %v1585, 4294901760
    %v1681 = vsub.f32 %v1585, %v1680
    %v1682 = vand.u32 %v1681, 4294901760
    %v1683 = vsub.f32 %v1681, %v1682
    %v1684 = vand.u32 %v1683, 4294901760
    %1685 = vmatpush1.msra.mxu0 %v1684
    %1686 = vmatprep.subr.mxu0 0.0
    %v1687 = vand.u32 %v1586, 4294901760
    %v1688 = vsub.f32 %v1586, %v1687
    %v1689 = vand.u32 %v1688, 4294901760
    %v1690 = vsub.f32 %v1688, %v1689
    %v1691 = vand.u32 %v1690, 4294901760
    %1692 = vmatpush1.msra.mxu0 %v1691
    %1693 = vmatprep.subr.mxu0 0.0
    %v1694 = vand.u32 %v1587, 4294901760
    %v1695 = vsub.f32 %v1587, %v1694
    %v1696 = vand.u32 %v1695, 4294901760
    %v1697 = vsub.f32 %v1695, %v1696
    %v1698 = vand.u32 %v1697, 4294901760
    %1699 = vmatpush1.msra.mxu0 %v1698
    %1700 = vmatprep.subr.mxu0 0.0
    %v1701 = vand.u32 %v1588, 4294901760
    %v1702 = vsub.f32 %v1588, %v1701
    %v1703 = vand.u32 %v1702, 4294901760
    %v1704 = vsub.f32 %v1702, %v1703
    %v1705 = vand.u32 %v1704, 4294901760
    %1706 = vmatpush1.msra.mxu0 %v1705
    %1707 = vmatprep.subr.mxu0 0.0
    %1708 = vmatpush1.msra.mxu0 0.0
    %1709 = vmatprep.subr.mxu0 0.0
    %1710 = vmatpush1.msra.mxu0 0.0
    %1711 = vmatprep.subr.mxu0 0.0
    %1712 = vmatpush1.msra.mxu0 0.0
    %1713 = vmatprep.subr.mxu0 0.0
    %1714 = vmatpush1.msra.mxu0 0.0
    %1715 = vmatprep.subr.mxu0 0.0
    %1716 = vmatpush1.msra.mxu0 0.0
    %1717 = vmatprep.subr.mxu0 0.0
    %1718 = vmatpush1.msra.mxu0 0.0
    %1719 = vmatprep.subr.mxu0 0.0
    %1720 = vmatpush1.msra.mxu0 0.0
    %1721 = vmatprep.subr.mxu0 0.0
    %1722 = vmatpush1.msra.mxu0 0.0
    %1723 = vmatprep.subr.mxu0 0.0
    %1724 = vmatpush1.msra.mxu0 0.0
    %1725 = vmatprep.subr.mxu0 0.0
    %1726 = vmatpush1.msra.mxu0 0.0
    %1727 = vmatprep.subr.mxu0 0.0
    %1728 = vmatpush1.msra.mxu0 0.0
    %1729 = vmatprep.subr.mxu0 0.0
    %1730 = vmatpush1.msra.mxu0 0.0
    %1731 = vmatprep.subr.mxu0 0.0
    %1732 = vmatpush1.msra.mxu0 0.0
    %1733 = vmatprep.subr.mxu0 0.0
    %1734 = vmatpush1.msra.mxu0 0.0
    %1735 = vmatprep.subr.mxu0 0.0
    %1736 = vmatpush1.msra.mxu0 0.0
    %1737 = vmatprep.subr.mxu0 0.0
    %1738 = vmatpush1.msra.mxu0 0.0
    %1739 = vmatprep.subr.mxu0 0.0
    %1740 = vmatpush1.msra.mxu0 0.0
    %1741 = vmatprep.subr.mxu0 0.0
    %1742 = vmatpush1.msra.mxu0 0.0
    %1743 = vmatprep.subr.mxu0 0.0
    %1744 = vmatpush1.msra.mxu0 0.0
    %1745 = vmatprep.subr.mxu0 0.0
    %1746 = vmatpush1.msra.mxu0 0.0
    %1747 = vmatprep.subr.mxu0 0.0
    %1748 = vmatpush1.msra.mxu0 0.0
    %1749 = vmatprep.subr.mxu0 0.0
    %1750 = vmatpush1.msra.mxu0 0.0
    %1751 = vmatprep.subr.mxu0 0.0
    %1752 = vmatpush1.msra.mxu0 0.0
    %1753 = vmatprep.subr.mxu0 0.0
    %1754 = vmatpush1.msra.mxu0 0.0
    %1755 = vmatprep.subr.mxu0 0.0
    %1756 = vmatpush1.msra.mxu0 0.0
    %1757 = vmatprep.subr.mxu0 0.0
    %1758 = vmatpush1.msra.mxu0 0.0
    %1759 = vmatprep.subr.mxu0 0.0
    %1760 = vmatpush1.msra.mxu0 0.0
    %1761 = vmatprep.subr.mxu0 0.0
    %1762 = vmatpush1.msra.mxu0 0.0
    %1763 = vmatprep.mubr.f32.mxu0 0.0
    %v1764 = vand.u32 %v1598, 4294901760
    %1765 = vmatmul.mubr.f32.gmra.mrb[0].mxu0 %v1764
    %v1766 = vpop.f32.mrb[0].mxu0
    %v1767 = vadd.f32 %v1676, %v1766
    %v1768 = vpop.f32.mrb[0].mxu0
    %1769 = vdwg.mxu0
    %1770 = vmatprep.subr.mxu0 0.0
    %v1771 = vand.u32 %v1585, 4294901760
    %v1772 = vsub.f32 %v1585, %v1771
    %1773 = vmatpush1.msra.mxu0 %v1772
    %1774 = vmatprep.subr.mxu0 0.0
    %v1775 = vand.u32 %v1586, 4294901760
    %v1776 = vsub.f32 %v1586, %v1775
    %1777 = vmatpush1.msra.mxu0 %v1776
    %1778 = vmatprep.subr.mxu0 0.0
    %v1779 = vand.u32 %v1587, 4294901760
    %v1780 = vsub.f32 %v1587, %v1779
    %1781 = vmatpush1.msra.mxu0 %v1780
    %1782 = vmatprep.subr.mxu0 0.0
    %v1783 = vand.u32 %v1588, 4294901760
    %v1784 = vsub.f32 %v1588, %v1783
    %1785 = vmatpush1.msra.mxu0 %v1784
    %1786 = vmatprep.subr.mxu0 0.0
    %1787 = vmatpush1.msra.mxu0 0.0
    %1788 = vmatprep.subr.mxu0 0.0
    %1789 = vmatpush1.msra.mxu0 0.0
    %1790 = vmatprep.subr.mxu0 0.0
    %1791 = vmatpush1.msra.mxu0 0.0
    %1792 = vmatprep.subr.mxu0 0.0
    %1793 = vmatpush1.msra.mxu0 0.0
    %1794 = vmatprep.subr.mxu0 0.0
    %1795 = vmatpush1.msra.mxu0 0.0
    %1796 = vmatprep.subr.mxu0 0.0
    %1797 = vmatpush1.msra.mxu0 0.0
    %1798 = vmatprep.subr.mxu0 0.0
    %1799 = vmatpush1.msra.mxu0 0.0
    %1800 = vmatprep.subr.mxu0 0.0
    %1801 = vmatpush1.msra.mxu0 0.0
    %1802 = vmatprep.subr.mxu0 0.0
    %1803 = vmatpush1.msra.mxu0 0.0
    %1804 = vmatprep.subr.mxu0 0.0
    %1805 = vmatpush1.msra.mxu0 0.0
    %1806 = vmatprep.subr.mxu0 0.0
    %1807 = vmatpush1.msra.mxu0 0.0
    %1808 = vmatprep.subr.mxu0 0.0
    %1809 = vmatpush1.msra.mxu0 0.0
    %1810 = vmatprep.subr.mxu0 0.0
    %1811 = vmatpush1.msra.mxu0 0.0
    %1812 = vmatprep.subr.mxu0 0.0
    %1813 = vmatpush1.msra.mxu0 0.0
    %1814 = vmatprep.subr.mxu0 0.0
    %1815 = vmatpush1.msra.mxu0 0.0
    %1816 = vmatprep.subr.mxu0 0.0
    %1817 = vmatpush1.msra.mxu0 0.0
    %1818 = vmatprep.subr.mxu0 0.0
    %1819 = vmatpush1.msra.mxu0 0.0
    %1820 = vmatprep.subr.mxu0 0.0
    %1821 = vmatpush1.msra.mxu0 0.0
    %1822 = vmatprep.subr.mxu0 0.0
    %1823 = vmatpush1.msra.mxu0 0.0
    %1824 = vmatprep.subr.mxu0 0.0
    %1825 = vmatpush1.msra.mxu0 0.0
    %1826 = vmatprep.subr.mxu0 0.0
    %1827 = vmatpush1.msra.mxu0 0.0
    %1828 = vmatprep.subr.mxu0 0.0
    %1829 = vmatpush1.msra.mxu0 0.0
    %1830 = vmatprep.subr.mxu0 0.0
    %1831 = vmatpush1.msra.mxu0 0.0
    %1832 = vmatprep.subr.mxu0 0.0
    %1833 = vmatpush1.msra.mxu0 0.0
    %1834 = vmatprep.subr.mxu0 0.0
    %1835 = vmatpush1.msra.mxu0 0.0
    %1836 = vmatprep.subr.mxu0 0.0
    %1837 = vmatpush1.msra.mxu0 0.0
    %1838 = vmatprep.subr.mxu0 0.0
    %1839 = vmatpush1.msra.mxu0 0.0
    %1840 = vmatprep.subr.mxu0 0.0
    %1841 = vmatpush1.msra.mxu0 0.0
    %1842 = vmatprep.mubr.f32.mxu0 0.0
    %v1843 = vand.u32 %v1598, 4294901760
    %v1844 = vsub.f32 %v1598, %v1843
    %1845 = vmatmul.mubr.f32.gmra.mrb[0].mxu0 %v1844
    %v1846 = vpop.f32.mrb[0].mxu0
    %v1847 = vadd.f32 %v1767, %v1846
    %v1848 = vpop.f32.mrb[0].mxu0
    %1849 = vdwg.mxu0
    %1850 = vmatprep.subr.mxu0 0.0
    %v1851 = vand.u32 %v1585, 4294901760
    %1852 = vmatpush1.msra.mxu0 %v1851
    %1853 = vmatprep.subr.mxu0 0.0
    %v1854 = vand.u32 %v1586, 4294901760
    %1855 = vmatpush1.msra.mxu0 %v1854
    %1856 = vmatprep.subr.mxu0 0.0
    %v1857 = vand.u32 %v1587, 4294901760
    %1858 = vmatpush1.msra.mxu0 %v1857
    %1859 = vmatprep.subr.mxu0 0.0
    %v1860 = vand.u32 %v1588, 4294901760
    %1861 = vmatpush1.msra.mxu0 %v1860
    %1862 = vmatprep.subr.mxu0 0.0
    %1863 = vmatpush1.msra.mxu0 0.0
    %1864 = vmatprep.subr.mxu0 0.0
    %1865 = vmatpush1.msra.mxu0 0.0
    %1866 = vmatprep.subr.mxu0 0.0
    %1867 = vmatpush1.msra.mxu0 0.0
    %1868 = vmatprep.subr.mxu0 0.0
    %1869 = vmatpush1.msra.mxu0 0.0
    %1870 = vmatprep.subr.mxu0 0.0
    %1871 = vmatpush1.msra.mxu0 0.0
    %1872 = vmatprep.subr.mxu0 0.0
    %1873 = vmatpush1.msra.mxu0 0.0
    %1874 = vmatprep.subr.mxu0 0.0
    %1875 = vmatpush1.msra.mxu0 0.0
    %1876 = vmatprep.subr.mxu0 0.0
    %1877 = vmatpush1.msra.mxu0 0.0
    %1878 = vmatprep.subr.mxu0 0.0
    %1879 = vmatpush1.msra.mxu0 0.0
    %1880 = vmatprep.subr.mxu0 0.0
    %1881 = vmatpush1.msra.mxu0 0.0
    %1882 = vmatprep.subr.mxu0 0.0
    %1883 = vmatpush1.msra.mxu0 0.0
    %1884 = vmatprep.subr.mxu0 0.0
    %1885 = vmatpush1.msra.mxu0 0.0
    %1886 = vmatprep.subr.mxu0 0.0
    %1887 = vmatpush1.msra.mxu0 0.0
    %1888 = vmatprep.subr.mxu0 0.0
    %1889 = vmatpush1.msra.mxu0 0.0
    %1890 = vmatprep.subr.mxu0 0.0
    %1891 = vmatpush1.msra.mxu0 0.0
    %1892 = vmatprep.subr.mxu0 0.0
    %1893 = vmatpush1.msra.mxu0 0.0
    %1894 = vmatprep.subr.mxu0 0.0
    %1895 = vmatpush1.msra.mxu0 0.0
    %1896 = vmatprep.subr.mxu0 0.0
    %1897 = vmatpush1.msra.mxu0 0.0
    %1898 = vmatprep.subr.mxu0 0.0
    %1899 = vmatpush1.msra.mxu0 0.0
    %1900 = vmatprep.subr.mxu0 0.0
    %1901 = vmatpush1.msra.mxu0 0.0
    %1902 = vmatprep.subr.mxu0 0.0
    %1903 = vmatpush1.msra.mxu0 0.0
    %1904 = vmatprep.subr.mxu0 0.0
    %1905 = vmatpush1.msra.mxu0 0.0
    %1906 = vmatprep.subr.mxu0 0.0
    %1907 = vmatpush1.msra.mxu0 0.0
    %1908 = vmatprep.subr.mxu0 0.0
    %1909 = vmatpush1.msra.mxu0 0.0
    %1910 = vmatprep.subr.mxu0 0.0
    %1911 = vmatpush1.msra.mxu0 0.0
    %1912 = vmatprep.subr.mxu0 0.0
    %1913 = vmatpush1.msra.mxu0 0.0
    %1914 = vmatprep.subr.mxu0 0.0
    %1915 = vmatpush1.msra.mxu0 0.0
    %1916 = vmatprep.subr.mxu0 0.0
    %1917 = vmatpush1.msra.mxu0 0.0
    %1918 = vmatprep.mubr.f32.mxu0 0.0
    %v1919 = vand.u32 %v1598, 4294901760
    %v1920 = vsub.f32 %v1598, %v1919
    %v1921 = vand.u32 %v1920, 4294901760
    %1922 = vmatmul.mubr.f32.gmra.mrb[0].mxu0 %v1921
    %v1923 = vpop.f32.mrb[0].mxu0
    %v1924 = vadd.f32 %v1847, %v1923
    %v1925 = vpop.f32.mrb[0].mxu0
    %1926 = vdwg.mxu0
    %1927 = vmatprep.subr.mxu0 0.0
    %v1928 = vand.u32 %v1585, 4294901760
    %v1929 = vsub.f32 %v1585, %v1928
    %v1930 = vand.u32 %v1929, 4294901760
    %1931 = vmatpush1.msra.mxu0 %v1930
    %1932 = vmatprep.subr.mxu0 0.0
    %v1933 = vand.u32 %v1586, 4294901760
    %v1934 = vsub.f32 %v1586, %v1933
    %v1935 = vand.u32 %v1934, 4294901760
    %1936 = vmatpush1.msra.mxu0 %v1935
    %1937 = vmatprep.subr.mxu0 0.0
    %v1938 = vand.u32 %v1587, 4294901760
    %v1939 = vsub.f32 %v1587, %v1938
    %v1940 = vand.u32 %v1939, 4294901760
    %1941 = vmatpush1.msra.mxu0 %v1940
    %1942 = vmatprep.subr.mxu0 0.0
    %v1943 = vand.u32 %v1588, 4294901760
    %v1944 = vsub.f32 %v1588, %v1943
    %v1945 = vand.u32 %v1944, 4294901760
    %1946 = vmatpush1.msra.mxu0 %v1945
    %1947 = vmatprep.subr.mxu0 0.0
    %1948 = vmatpush1.msra.mxu0 0.0
    %1949 = vmatprep.subr.mxu0 0.0
    %1950 = vmatpush1.msra.mxu0 0.0
    %1951 = vmatprep.subr.mxu0 0.0
    %1952 = vmatpush1.msra.mxu0 0.0
    %1953 = vmatprep.subr.mxu0 0.0
    %1954 = vmatpush1.msra.mxu0 0.0
    %1955 = vmatprep.subr.mxu0 0.0
    %1956 = vmatpush1.msra.mxu0 0.0
    %1957 = vmatprep.subr.mxu0 0.0
    %1958 = vmatpush1.msra.mxu0 0.0
    %1959 = vmatprep.subr.mxu0 0.0
    %1960 = vmatpush1.msra.mxu0 0.0
    %1961 = vmatprep.subr.mxu0 0.0
    %1962 = vmatpush1.msra.mxu0 0.0
    %1963 = vmatprep.subr.mxu0 0.0
    %1964 = vmatpush1.msra.mxu0 0.0
    %1965 = vmatprep.subr.mxu0 0.0
    %1966 = vmatpush1.msra.mxu0 0.0
    %1967 = vmatprep.subr.mxu0 0.0
    %1968 = vmatpush1.msra.mxu0 0.0
    %1969 = vmatprep.subr.mxu0 0.0
    %1970 = vmatpush1.msra.mxu0 0.0
    %1971 = vmatprep.subr.mxu0 0.0
    %1972 = vmatpush1.msra.mxu0 0.0
    %1973 = vmatprep.subr.mxu0 0.0
    %1974 = vmatpush1.msra.mxu0 0.0
    %1975 = vmatprep.subr.mxu0 0.0
    %1976 = vmatpush1.msra.mxu0 0.0
    %1977 = vmatprep.subr.mxu0 0.0
    %1978 = vmatpush1.msra.mxu0 0.0
    %1979 = vmatprep.subr.mxu0 0.0
    %1980 = vmatpush1.msra.mxu0 0.0
    %1981 = vmatprep.subr.mxu0 0.0
    %1982 = vmatpush1.msra.mxu0 0.0
    %1983 = vmatprep.subr.mxu0 0.0
    %1984 = vmatpush1.msra.mxu0 0.0
    %1985 = vmatprep.subr.mxu0 0.0
    %1986 = vmatpush1.msra.mxu0 0.0
    %1987 = vmatprep.subr.mxu0 0.0
    %1988 = vmatpush1.msra.mxu0 0.0
    %1989 = vmatprep.subr.mxu0 0.0
    %1990 = vmatpush1.msra.mxu0 0.0
    %1991 = vmatprep.subr.mxu0 0.0
    %1992 = vmatpush1.msra.mxu0 0.0
    %1993 = vmatprep.subr.mxu0 0.0
    %1994 = vmatpush1.msra.mxu0 0.0
    %1995 = vmatprep.subr.mxu0 0.0
    %1996 = vmatpush1.msra.mxu0 0.0
    %1997 = vmatprep.subr.mxu0 0.0
    %1998 = vmatpush1.msra.mxu0 0.0
    %1999 = vmatprep.subr.mxu0 0.0
    %2000 = vmatpush1.msra.mxu0 0.0
    %2001 = vmatprep.subr.mxu0 0.0
    %2002 = vmatpush1.msra.mxu0 0.0
    %2003 = vmatprep.mubr.f32.mxu0 0.0
    %v2004 = vand.u32 %v1598, 4294901760
    %2005 = vmatmul.mubr.f32.gmra.mrb[0].mxu0 %v2004
    %v2006 = vpop.f32.mrb[0].mxu0
    %v2007 = vadd.f32 %v1924, %v2006
    %v2008 = vpop.f32.mrb[0].mxu0
    %2009 = vdwg.mxu0
    %2010 = vmatprep.subr.mxu0 0.0
    %v2011 = vand.u32 %v1585, 4294901760
    %2012 = vmatpush1.msra.mxu0 %v2011
    %2013 = vmatprep.subr.mxu0 0.0
    %v2014 = vand.u32 %v1586, 4294901760
    %2015 = vmatpush1.msra.mxu0 %v2014
    %2016 = vmatprep.subr.mxu0 0.0
    %v2017 = vand.u32 %v1587, 4294901760
    %2018 = vmatpush1.msra.mxu0 %v2017
    %2019 = vmatprep.subr.mxu0 0.0
    %v2020 = vand.u32 %v1588, 4294901760
    %2021 = vmatpush1.msra.mxu0 %v2020
    %2022 = vmatprep.subr.mxu0 0.0
    %2023 = vmatpush1.msra.mxu0 0.0
    %2024 = vmatprep.subr.mxu0 0.0
    %2025 = vmatpush1.msra.mxu0 0.0
    %2026 = vmatprep.subr.mxu0 0.0
    %2027 = vmatpush1.msra.mxu0 0.0
    %2028 = vmatprep.subr.mxu0 0.0
    %2029 = vmatpush1.msra.mxu0 0.0
    %2030 = vmatprep.subr.mxu0 0.0
    %2031 = vmatpush1.msra.mxu0 0.0
    %2032 = vmatprep.subr.mxu0 0.0
    %2033 = vmatpush1.msra.mxu0 0.0
    %2034 = vmatprep.subr.mxu0 0.0
    %2035 = vmatpush1.msra.mxu0 0.0
    %2036 = vmatprep.subr.mxu0 0.0
    %2037 = vmatpush1.msra.mxu0 0.0
    %2038 = vmatprep.subr.mxu0 0.0
    %2039 = vmatpush1.msra.mxu0 0.0
    %2040 = vmatprep.subr.mxu0 0.0
    %2041 = vmatpush1.msra.mxu0 0.0
    %2042 = vmatprep.subr.mxu0 0.0
    %2043 = vmatpush1.msra.mxu0 0.0
    %2044 = vmatprep.subr.mxu0 0.0
    %2045 = vmatpush1.msra.mxu0 0.0
    %2046 = vmatprep.subr.mxu0 0.0
    %2047 = vmatpush1.msra.mxu0 0.0
    %2048 = vmatprep.subr.mxu0 0.0
    %2049 = vmatpush1.msra.mxu0 0.0
    %2050 = vmatprep.subr.mxu0 0.0
    %2051 = vmatpush1.msra.mxu0 0.0
    %2052 = vmatprep.subr.mxu0 0.0
    %2053 = vmatpush1.msra.mxu0 0.0
    %2054 = vmatprep.subr.mxu0 0.0
    %2055 = vmatpush1.msra.mxu0 0.0
    %2056 = vmatprep.subr.mxu0 0.0
    %2057 = vmatpush1.msra.mxu0 0.0
    %2058 = vmatprep.subr.mxu0 0.0
    %2059 = vmatpush1.msra.mxu0 0.0
    %2060 = vmatprep.subr.mxu0 0.0
    %2061 = vmatpush1.msra.mxu0 0.0
    %2062 = vmatprep.subr.mxu0 0.0
    %2063 = vmatpush1.msra.mxu0 0.0
    %2064 = vmatprep.subr.mxu0 0.0
    %2065 = vmatpush1.msra.mxu0 0.0
    %2066 = vmatprep.subr.mxu0 0.0
    %2067 = vmatpush1.msra.mxu0 0.0
    %2068 = vmatprep.subr.mxu0 0.0
    %2069 = vmatpush1.msra.mxu0 0.0
    %2070 = vmatprep.subr.mxu0 0.0
    %2071 = vmatpush1.msra.mxu0 0.0
    %2072 = vmatprep.subr.mxu0 0.0
    %2073 = vmatpush1.msra.mxu0 0.0
    %2074 = vmatprep.subr.mxu0 0.0
    %2075 = vmatpush1.msra.mxu0 0.0
    %2076 = vmatprep.subr.mxu0 0.0
    %2077 = vmatpush1.msra.mxu0 0.0
    %2078 = vmatprep.mubr.f32.mxu0 0.0
    %v2079 = vand.u32 %v1598, 4294901760
    %2080 = vmatmul.mubr.f32.gmra.mrb[0].mxu0 %v2079
    %v2081 = vpop.f32.mrb[0].mxu0
    %v2082 = vadd.f32 %v2007, %v2081
    %v2083 = vpop.f32.mrb[0].mxu0
    %2084 = vdwg.mxu0
    %2085 = vst.msk [vmem:[#allocation2] sm:$0xff] %vm85, %v2082
    // Predicated region
    $region30: #{tpu_custom_call.1} parent=1 // pred_check
      _
    $region31: #{tpu_custom_call.1} parent=1 // pred_check_branch
      %2087 = sbr.rel (0) target = $region33
    $region32: #{tpu_custom_call.1} parent=1 // pred_region
      %s2089 = ssub.s32 128, 128
      %2090 = vsyncadd [#allocation3], %s2089
      %s2092 = sshll.u32 [#allocation2], 4
      %s2093 = int_to_ptr.vmem [resolvable:$true] %s2092
      %2095 = dma.vmem_to_hbm [thread:$0]  %s2093, 128, %s7, [#allocation3]
    $region33: #{tpu_custom_call.1} parent=1 // pred_fallthru
      _
    // Predicated region
    $region34: #{tpu_custom_call.1} parent=1 // pred_check
      _
    $region35: #{tpu_custom_call.1} parent=1 // pred_check_branch
      %2097 = sbr.rel (0) target = $region37
    $region36: #{tpu_custom_call.1} parent=1 // pred_region
      %2098 = dma.done [#allocation3], 128
    $region37: #{tpu_custom_call.1} parent=1 // pred_fallthru
      _
    %2099 = vsyncpa [#allocation3], 1

</llo_original>
